<compile_context>
chip_gen: v7x
topology: tpu7x:2x2x1
jax: 0.10.0
libtpu: 0.0.40
codegen_flags: <defaults>
</compile_context>

<pallas_src>
import numpy as np
import jax
import jax.numpy as jnp
from jax.experimental import pallas as pl
from jax.experimental.pallas import tpu as pltpu

# ----------------------------- model constants -----------------------------
B = 2             # batch (hands per call)
V = 778           # MANO vertex count
NJ = 16           # MANO joints
NB = 10           # shape betas
NP = 15 * 9       # pose-blendshape features (135)
KTOT = NB + NP    # fused blendshape contraction dim (145)
V3 = V * 3        # 2334 (interleaved; raw/reference params only)
VP = 1024         # V padded to a multiple of 128 that splits evenly into tiles
NUM_VTILES = 2    # vertex-lane tiles: dual-TC sharding on v7x + bounded vregs
VT = VP // NUM_VTILES   # 512 lanes per tile (multiple of 128)

# real MANO kinematic tree (wrist + 5 fingers x 3 joints)
PARENTS = np.array([-1, 0, 1, 2, 0, 4, 5, 0, 7, 8, 0, 10, 11, 0, 13, 14],
                   dtype=np.int32)
# smplx vertex_ids['mano'] fingertip vertex indices (thumb, index, middle, ring, pinky)
EXTRA_JOINT_IDXS = np.array([744, 320, 443, 554, 671], dtype=np.int32)
# mano_to_openpose joint map (21 joints)
JOINT_MAP = np.array([0, 13, 14, 15, 16, 1, 2, 3, 17, 4, 5, 6,
                      18, 10, 11, 12, 19, 7, 8, 9, 20], dtype=np.int32)


# ------------------------------- Pallas kernel -------------------------------
def _mano_fused_kernel(lhs_ref, at_ref, wq_ref, vtpl_ref, wt_ref, out_ref):
    """Fused blendshapes + LBS for one 512-lane vertex tile.

    lhs_ref : (B, KTOT)      bf16  [betas | pose_feat], int8 scales folded in
    at_ref  : (12*B, NJ)     f32   row k*B+b = element k of batch b's 4x4
    wq_ref  : (3, KTOT, VT)  int8  fused [shapedirs | posedirs] slab, per plane
    vtpl_ref: (3, VT)        f32   v_template, planar (kept f32 for accuracy)
    wt_ref  : (NJ, VT)       bf16  lbs_weights^T
    out_ref : (3, B, VT)     f32   skinned vertices, planar
    """
    lhs = lhs_ref[...]                                              # (B, KTOT) bf16

    # --- fused blendshapes: one K=145 contraction per plane (x, y, z) -------
    v_posed = []
    for p in range(3):                                              # static unroll
        # int8 -> bf16 is exact (|q| <= 127 fits bf16 mantissa); the per-row
        # dequant scales already live in lhs, so this dot is the full dequant.
        w_p = wq_ref[p].astype(jnp.bfloat16)                        # (KTOT, VT)
        off = jnp.dot(lhs, w_p, preferred_element_type=jnp.float32)  # (B, VT) f32
        v_posed.append(off + vtpl_ref[p:p + 1, :])                  # f32 template add
    vx, vy, vz = v_posed                                            # (B, VT) each

    # --- per-vertex blended transforms (rows 12..15 of the 4x4 are unused) --
    t = jnp.dot(at_ref[...], wt_ref[...].astype(jnp.float32),
                preferred_element_type=jnp.float32)                 # (12*B, VT) f32

    def tk(k):                                                      # (B, VT) f32
        return t[k * B:(k + 1) * B]

    # direct lane-dense row stores (no concatenate / sublane assembly)
    out_ref[0] = tk(0) * vx + tk(1) * vy + tk(2) * vz + tk(3)       # x
    out_ref[1] = tk(4) * vx + tk(5) * vy + tk(6) * vz + tk(7)       # y
    out_ref[2] = tk(8) * vx + tk(9) * vy + tk(10) * vz + tk(11)     # z


def mano_fused_pallas(lhs_bf16, a_t12, blend_q8, vtpl_pl, wt_bf16):
    return pl.pallas_call(
        _mano_fused_kernel,
        out_shape=jax.ShapeDtypeStruct((3, B, VP), jnp.float32),
        grid=(NUM_VTILES,),
        in_specs=[pl.BlockSpec((B, KTOT), lambda i: (0, 0)),
                  pl.BlockSpec((12 * B, NJ), lambda i: (0, 0)),
                  pl.BlockSpec((3, KTOT, VT), lambda i: (0, 0, i)),
                  pl.BlockSpec((3, VT), lambda i: (0, i)),
                  pl.BlockSpec((NJ, VT), lambda i: (0, i))],
        out_specs=pl.BlockSpec((3, B, VT), lambda i: (0, 0, i)),
        compiler_params=pltpu.CompilerParams(
            dimension_semantics=("parallel",)),
    )(lhs_bf16, a_t12, blend_q8, vtpl_pl, wt_bf16)


# --------------------------------- JAX glue ---------------------------------
def batch_rodrigues(rot_vecs):
    """Axis-angle (N, 3) -> rotation matrices (N, 3, 3). Matches smplx."""
    eps = 1e-8
    angle = jnp.linalg.norm(rot_vecs + eps, axis=1, keepdims=True)   # (N, 1)
    rot_dir = rot_vecs / angle
    cos = jnp.cos(angle)[:, :, None]                                 # (N, 1, 1)
    sin = jnp.sin(angle)[:, :, None]
    rx, ry, rz = jnp.split(rot_dir, 3, axis=1)
    zeros = jnp.zeros_like(rx)
    Km = jnp.concatenate([zeros, -rz, ry, rz, zeros, -rx, -ry, rx, zeros],
                         axis=1).reshape(-1, 3, 3)
    ident = jnp.eye(3, dtype=rot_vecs.dtype)[None]
    return ident + sin * Km + (1.0 - cos) * jnp.matmul(Km, Km)


def batch_rigid_transform(rot_mats, joints, parents):
    """Matches smplx.lbs.batch_rigid_transform."""
    b, nj = joints.shape[:2]
    rel_joints = joints.at[:, 1:].add(-joints[:, parents[1:]])
    T = jnp.zeros((b, nj, 4, 4), jnp.float32)
    T = T.at[:, :, :3, :3].set(rot_mats)
    T = T.at[:, :, :3, 3].set(rel_joints)
    T = T.at[:, :, 3, 3].set(1.0)

    chain = [T[:, 0]]
    for i in range(1, nj):
        chain.append(jnp.matmul(chain[int(parents[i])], T[:, i]))
    transforms = jnp.stack(chain, axis=1)                            # (B, NJ, 4, 4)

    posed_joints = transforms[:, :, :3, 3]
    joints_homo = jnp.concatenate(
        [joints, jnp.zeros((b, nj, 1), jnp.float32)], axis=2)        # (B, NJ, 4)
    trans_j = jnp.einsum('bjmn,bjn->bjm', transforms, joints_homo)   # (B, NJ, 4)
    rel_transforms = transforms.at[:, :, :, 3].add(-trans_j)
    return posed_joints, rel_transforms


def mano_v2_forward(params, betas, global_orient, hand_pose, transl):
    # full pose (axis-angle, flat_hand_mean=True, use_pca=False)
    full_pose = jnp.concatenate([global_orient, hand_pose], axis=1)      # (B, 48)
    rot_mats = batch_rodrigues(full_pose.reshape(-1, 3)).reshape(B, NJ, 3, 3)
    ident = jnp.eye(3, dtype=jnp.float32)
    pose_feat = (rot_mats[:, 1:] - ident).reshape(B, NP)                 # (B, 135)

    # fused LHS: [betas | pose_feat] with the int8 per-K-row scales folded in
    lhs = jnp.concatenate([betas, pose_feat], axis=1) * params['k_scales'][None, :]
    lhs = lhs.astype(jnp.bfloat16)                                       # (B, 145)

    # joints via folded regressor (exact: J_regressor is linear in v_shaped)
    J = (params['J_template_flat'] +
         jnp.dot(betas, params['J_shapedirs_mat'],
                 precision=jax.lax.Precision.HIGHEST)).reshape(B, NJ, 3)

    # kinematic chain over 16 joints (tiny, plain JAX) — runs BEFORE the kernel
    posed_joints, A = batch_rigid_transform(rot_mats, J, PARENTS)
    # only the 12 used rows of each flattened 4x4; row k*B+b = element k, batch b
    a_t = jnp.transpose(A.reshape(B, NJ, 16)[:, :, :12],
                        (2, 0, 1)).reshape(12 * B, NJ)                   # (24, 16) f32

    # single fused Pallas kernel: blendshapes + LBS, planar lane-dense output
    verts_t = mano_fused_pallas(lhs, a_t, params['blend_q8'],
                                params['v_template_planar'],
                                params['lbs_weights_t'])                 # (3, B, VP)

    verts = jnp.transpose(verts_t[:, :, :V], (1, 2, 0))                  # (B, V, 3)
    verts = verts + transl[:, None, :]
    joints = posed_joints + transl[:, None, :]

    # MANOv2 wrapper: fingertip joints from vertices + OpenPose reordering
    extra = verts[:, jnp.asarray(EXTRA_JOINT_IDXS), :]
    joints = jnp.concatenate([joints, extra], axis=1)
    joints = joints[:, jnp.asarray(JOINT_MAP), :]                        # (B, 21, 3)
    return verts, joints


def mano_v2_reference(params, betas, global_orient, hand_pose, transl):
    """Pure-JAX reference (no Pallas, raw f32 params) for a correctness check."""
    hp = jax.lax.Precision.HIGHEST
    full_pose = jnp.concatenate([global_orient, hand_pose], axis=1)
    rot_mats = batch_rodrigues(full_pose.reshape(-1, 3)).reshape(B, NJ, 3, 3)
    ident = jnp.eye(3, dtype=jnp.float32)
    pose_feat = (rot_mats[:, 1:] - ident).reshape(B, NP)

    v_shaped = params['v_template'] + jnp.einsum(
        'bl,mkl->bmk', betas, params['shapedirs'], precision=hp)
    pose_off = jnp.matmul(pose_feat, params['posedirs'],
                          precision=hp).reshape(B, V, 3)
    v_posed = v_shaped + pose_off
    J = jnp.einsum('bik,ji->bjk', v_shaped, params['J_regressor'], precision=hp)

    posed_joints, A = batch_rigid_transform(rot_mats, J, PARENTS)
    T = jnp.einsum('vj,bjk->bvk', params['lbs_weights'],
                   A.reshape(B, NJ, 16), precision=hp).reshape(B, V, 4, 4)
    v_h = jnp.concatenate([v_posed, jnp.ones((B, V, 1), jnp.float32)], axis=2)
    verts = jnp.einsum('bvmn,bvn->bvm', T, v_h, precision=hp)[:, :, :3]

    verts = verts + transl[:, None, :]
    joints = posed_joints + transl[:, None, :]
    extra = verts[:, jnp.asarray(EXTRA_JOINT_IDXS), :]
    joints = jnp.concatenate([joints, extra], axis=1)[:, jnp.asarray(JOINT_MAP), :]
    return verts, joints


# ----------------------------------- main -----------------------------------
if __name__ == "__main__":
    key = jax.random.PRNGKey(0)
    ks = jax.random.split(key, 10)

    # deterministic synthetic MANO parameters (shapes match the real model)
    v_template = 0.1 * jax.random.normal(ks[0], (V, 3), jnp.float32)
    shapedirs = 0.01 * jax.random.normal(ks[1], (V, 3, NB), jnp.float32)
    posedirs = 0.01 * jax.random.normal(ks[2], (NP, V3), jnp.float32)
    jreg = jax.random.uniform(ks[3], (NJ, V), jnp.float32)
    jreg = jreg / jnp.sum(jreg, axis=1, keepdims=True)
    lbs_w = jax.random.uniform(ks[4], (V, NJ), jnp.float32)
    lbs_w = lbs_w / jnp.sum(lbs_w, axis=1, keepdims=True)

    pad_v = VP - V  # 246 zero-padded vertex lanes (sliced off in the wrapper;
                    # padded columns of the weight slab and lbs weights are zero)

    # fused [shapedirs | posedirs] slab, planar per-plane: (KTOT, 3, V) -> pad
    sd = jnp.transpose(shapedirs, (2, 1, 0))                         # (NB, 3, V)
    pd = jnp.transpose(posedirs.reshape(NP, V, 3), (0, 2, 1))        # (NP, 3, V)
    blend = jnp.concatenate([sd, pd], axis=0)                        # (KTOT, 3, V)
    blend = jnp.pad(blend, ((0, 0), (0, 0), (0, pad_v)))             # (KTOT, 3, VP)

    # per-K-row symmetric int8 quantization; scales folded into the LHS at runtime
    k_scales = jnp.maximum(jnp.max(jnp.abs(blend), axis=(1, 2)), 1e-12) / 127.0
    blend_q8 = jnp.clip(jnp.round(blend / k_scales[:, None, None]),
                        -127, 127).astype(jnp.int8)
    blend_q8 = jnp.transpose(blend_q8, (1, 0, 2))                    # (3, KTOT, VP)

    vt_pl = jnp.pad(v_template.T, ((0, 0), (0, pad_v)))              # (3, VP) f32
    wt_pad = jnp.pad(lbs_w.T, ((0, 0), (0, pad_v))).astype(jnp.bfloat16)  # (NJ, VP)

    # fold J_regressor into the beta blendshapes (exact, linear)
    J_template = jnp.matmul(jreg, v_template,
                            precision=jax.lax.Precision.HIGHEST)      # (NJ, 3)
    J_shapedirs = jnp.einsum('jv,vcl->ljc', jreg, shapedirs,
                             precision=jax.lax.Precision.HIGHEST)     # (NB, NJ, 3)

    params = dict(
        # raw f32 params (reference only)
        v_template=v_template,
        shapedirs=shapedirs,
        posedirs=posedirs,
        J_regressor=jreg,
        lbs_weights=lbs_w,
        # prepared params (Pallas forward)
        blend_q8=blend_q8,
        k_scales=k_scales,
        v_template_planar=vt_pl,
        lbs_weights_t=wt_pad,
        J_template_flat=J_template.reshape(1, NJ * 3),
        J_shapedirs_mat=J_shapedirs.reshape(NB, NJ * 3),
    )

    # deterministic example inputs
    betas = 0.5 * jax.random.normal(ks[5], (B, NB), jnp.float32)
    global_orient = 0.3 * jax.random.normal(ks[6], (B, 3), jnp.float32)
    hand_pose = 0.3 * jax.random.normal(ks[7], (B, 45), jnp.float32)
    transl = 0.1 * jax.random.normal(ks[8], (B, 3), jnp.float32)

    verts, joints = jax.jit(mano_v2_forward)(
        params, betas, global_orient, hand_pose, transl)
    verts = jax.block_until_ready(verts)
    joints = jax.block_until_ready(joints)

    assert verts.shape == (B, V, 3)
    assert joints.shape == (B, 21, 3)
    assert bool(jnp.all(jnp.isfinite(verts))) and bool(jnp.all(jnp.isfinite(joints)))

    r_verts, r_joints = jax.jit(mano_v2_reference)(
        params, betas, global_orient, hand_pose, transl)
    assert np.allclose(np.asarray(verts), np.asarray(r_verts),
                       rtol=2e-2, atol=2e-2)
    assert np.allclose(np.asarray(joints), np.asarray(r_joints),
                       rtol=2e-2, atol=2e-2)

    print("KERNEL_OK")
</pallas_src>

<mosaic_0001>
module attributes {stable_mosaic.version = 11 : i64} {
  func.func @_mano_fused_kernel(%arg0: i32, %arg1: memref<2x145xbf16, #tpu.memory_space<vmem>>, %arg2: memref<24x16xf32, #tpu.memory_space<vmem>>, %arg3: memref<3x145x512xi8, #tpu.memory_space<vmem>>, %arg4: memref<3x512xf32, #tpu.memory_space<vmem>>, %arg5: memref<16x512xbf16, #tpu.memory_space<vmem>>, %arg6: memref<3x2x512xf32, #tpu.memory_space<vmem>>) attributes {dimension_semantics = [#tpu.dimension_semantics<parallel>], iteration_bounds = array<i64: 2>, scalar_prefetch = 0 : i64, scratch_operands = 0 : i64, tpu.core_type = #tpu.core_type<tc>, window_params = [{pipeline_mode = #tpu.pipeline_mode<synchronous>, transform_indices = @transform_0, window_bounds = array<i64: 2, 145>}, {pipeline_mode = #tpu.pipeline_mode<synchronous>, transform_indices = @transform_1, window_bounds = array<i64: 24, 16>}, {transform_indices = @transform_2, window_bounds = array<i64: 3, 145, 512>}, {transform_indices = @transform_3, window_bounds = array<i64: 3, 512>}, {transform_indices = @transform_4, window_bounds = array<i64: 16, 512>}, {transform_indices = @transform_5, window_bounds = array<i64: 3, 2, 512>}]} {
    %c0 = arith.constant 0 : index
    %c0_0 = arith.constant 0 : index
    %0 = vector.load %arg1[%c0, %c0_0] : memref<2x145xbf16, #tpu.memory_space<vmem>>, vector<2x145xbf16>
    %c0_1 = arith.constant 0 : index
    %c0_2 = arith.constant 0 : index
    %c0_3 = arith.constant 0 : index
    %1 = vector.load %arg3[%c0_1, %c0_2, %c0_3] : memref<3x145x512xi8, #tpu.memory_space<vmem>>, vector<1x145x512xi8>
    %2 = vector.shape_cast %1 : vector<1x145x512xi8> to vector<145x512xi8>
    %3 = arith.sitofp %2 : vector<145x512xi8> to vector<145x512xbf16>
    %cst = arith.constant dense<0.000000e+00> : vector<2x512xf32>
    %4 = tpu.matmul %0, %3, %cst {dimension_numbers = #tpu.dot_dimension_numbers<[1], [0], [0], [1], [0, 0, 1, 1], [], []>} : vector<2x145xbf16>, vector<145x512xbf16>, vector<2x512xf32> -> vector<2x512xf32>
    %c0_4 = arith.constant 0 : index
    %c0_5 = arith.constant 0 : index
    %5 = vector.load %arg4[%c0_4, %c0_5] : memref<3x512xf32, #tpu.memory_space<vmem>>, vector<1x512xf32>
    %6 = vector.broadcast %5 : vector<1x512xf32> to vector<2x512xf32>
    %7 = arith.addf %4, %6 : vector<2x512xf32>
    %c1 = arith.constant 1 : index
    %c0_6 = arith.constant 0 : index
    %c0_7 = arith.constant 0 : index
    %8 = vector.load %arg3[%c1, %c0_6, %c0_7] : memref<3x145x512xi8, #tpu.memory_space<vmem>>, vector<1x145x512xi8>
    %9 = vector.shape_cast %8 : vector<1x145x512xi8> to vector<145x512xi8>
    %10 = arith.sitofp %9 : vector<145x512xi8> to vector<145x512xbf16>
    %cst_8 = arith.constant dense<0.000000e+00> : vector<2x512xf32>
    %11 = tpu.matmul %0, %10, %cst_8 {dimension_numbers = #tpu.dot_dimension_numbers<[1], [0], [0], [1], [0, 0, 1, 1], [], []>} : vector<2x145xbf16>, vector<145x512xbf16>, vector<2x512xf32> -> vector<2x512xf32>
    %c1_9 = arith.constant 1 : index
    %c0_10 = arith.constant 0 : index
    %12 = vector.load %arg4[%c1_9, %c0_10] : memref<3x512xf32, #tpu.memory_space<vmem>>, vector<1x512xf32>
    %13 = vector.broadcast %12 : vector<1x512xf32> to vector<2x512xf32>
    %14 = arith.addf %11, %13 : vector<2x512xf32>
    %c2 = arith.constant 2 : index
    %c0_11 = arith.constant 0 : index
    %c0_12 = arith.constant 0 : index
    %15 = vector.load %arg3[%c2, %c0_11, %c0_12] : memref<3x145x512xi8, #tpu.memory_space<vmem>>, vector<1x145x512xi8>
    %16 = vector.shape_cast %15 : vector<1x145x512xi8> to vector<145x512xi8>
    %17 = arith.sitofp %16 : vector<145x512xi8> to vector<145x512xbf16>
    %cst_13 = arith.constant dense<0.000000e+00> : vector<2x512xf32>
    %18 = tpu.matmul %0, %17, %cst_13 {dimension_numbers = #tpu.dot_dimension_numbers<[1], [0], [0], [1], [0, 0, 1, 1], [], []>} : vector<2x145xbf16>, vector<145x512xbf16>, vector<2x512xf32> -> vector<2x512xf32>
    %c2_14 = arith.constant 2 : index
    %c0_15 = arith.constant 0 : index
    %19 = vector.load %arg4[%c2_14, %c0_15] : memref<3x512xf32, #tpu.memory_space<vmem>>, vector<1x512xf32>
    %20 = vector.broadcast %19 : vector<1x512xf32> to vector<2x512xf32>
    %21 = arith.addf %18, %20 : vector<2x512xf32>
    %c0_16 = arith.constant 0 : index
    %c0_17 = arith.constant 0 : index
    %22 = vector.load %arg2[%c0_16, %c0_17] : memref<24x16xf32, #tpu.memory_space<vmem>>, vector<24x16xf32>
    %c0_18 = arith.constant 0 : index
    %c0_19 = arith.constant 0 : index
    %23 = vector.load %arg5[%c0_18, %c0_19] : memref<16x512xbf16, #tpu.memory_space<vmem>>, vector<16x512xbf16>
    %24 = arith.extf %23 : vector<16x512xbf16> to vector<16x512xf32>
    %cst_20 = arith.constant dense<0.000000e+00> : vector<24x512xf32>
    %25 = tpu.matmul %22, %24, %cst_20 {dimension_numbers = #tpu.dot_dimension_numbers<[1], [0], [0], [1], [0, 0, 1, 1], [], []>} : vector<24x16xf32>, vector<16x512xf32>, vector<24x512xf32> -> vector<24x512xf32>
    %26 = vector.extract_strided_slice %25 {offsets = [0, 0], sizes = [2, 512], strides = [1, 1]} : vector<24x512xf32> to vector<2x512xf32>
    %27 = arith.mulf %26, %7 : vector<2x512xf32>
    %28 = vector.extract_strided_slice %25 {offsets = [2, 0], sizes = [2, 512], strides = [1, 1]} : vector<24x512xf32> to vector<2x512xf32>
    %29 = arith.mulf %28, %14 : vector<2x512xf32>
    %30 = arith.addf %27, %29 : vector<2x512xf32>
    %31 = vector.extract_strided_slice %25 {offsets = [4, 0], sizes = [2, 512], strides = [1, 1]} : vector<24x512xf32> to vector<2x512xf32>
    %32 = arith.mulf %31, %21 : vector<2x512xf32>
    %33 = arith.addf %30, %32 : vector<2x512xf32>
    %34 = vector.extract_strided_slice %25 {offsets = [6, 0], sizes = [2, 512], strides = [1, 1]} : vector<24x512xf32> to vector<2x512xf32>
    %35 = arith.addf %33, %34 : vector<2x512xf32>
    %c0_21 = arith.constant 0 : index
    %c0_22 = arith.constant 0 : index
    %c0_23 = arith.constant 0 : index
    %36 = vector.load %arg6[%c0_21, %c0_22, %c0_23] : memref<3x2x512xf32, #tpu.memory_space<vmem>>, vector<1x2x512xf32>
    %37 = vector.shape_cast %36 : vector<1x2x512xf32> to vector<2x512xf32>
    %38 = vector.shape_cast %35 : vector<2x512xf32> to vector<1x2x512xf32>
    tpu.vector_store %arg6[%c0_21, %c0_22, %c0_23], %38 {strides = array<i32>} : memref<3x2x512xf32, #tpu.memory_space<vmem>>, vector<1x2x512xf32>,
    %39 = vector.extract_strided_slice %25 {offsets = [8, 0], sizes = [2, 512], strides = [1, 1]} : vector<24x512xf32> to vector<2x512xf32>
    %40 = arith.mulf %39, %7 : vector<2x512xf32>
    %41 = vector.extract_strided_slice %25 {offsets = [10, 0], sizes = [2, 512], strides = [1, 1]} : vector<24x512xf32> to vector<2x512xf32>
    %42 = arith.mulf %41, %14 : vector<2x512xf32>
    %43 = arith.addf %40, %42 : vector<2x512xf32>
    %44 = vector.extract_strided_slice %25 {offsets = [12, 0], sizes = [2, 512], strides = [1, 1]} : vector<24x512xf32> to vector<2x512xf32>
    %45 = arith.mulf %44, %21 : vector<2x512xf32>
    %46 = arith.addf %43, %45 : vector<2x512xf32>
    %47 = vector.extract_strided_slice %25 {offsets = [14, 0], sizes = [2, 512], strides = [1, 1]} : vector<24x512xf32> to vector<2x512xf32>
    %48 = arith.addf %46, %47 : vector<2x512xf32>
    %c1_24 = arith.constant 1 : index
    %c0_25 = arith.constant 0 : index
    %c0_26 = arith.constant 0 : index
    %49 = vector.load %arg6[%c1_24, %c0_25, %c0_26] : memref<3x2x512xf32, #tpu.memory_space<vmem>>, vector<1x2x512xf32>
    %50 = vector.shape_cast %49 : vector<1x2x512xf32> to vector<2x512xf32>
    %51 = vector.shape_cast %48 : vector<2x512xf32> to vector<1x2x512xf32>
    tpu.vector_store %arg6[%c1_24, %c0_25, %c0_26], %51 {strides = array<i32>} : memref<3x2x512xf32, #tpu.memory_space<vmem>>, vector<1x2x512xf32>,
    %52 = vector.extract_strided_slice %25 {offsets = [16, 0], sizes = [2, 512], strides = [1, 1]} : vector<24x512xf32> to vector<2x512xf32>
    %53 = arith.mulf %52, %7 : vector<2x512xf32>
    %54 = vector.extract_strided_slice %25 {offsets = [18, 0], sizes = [2, 512], strides = [1, 1]} : vector<24x512xf32> to vector<2x512xf32>
    %55 = arith.mulf %54, %14 : vector<2x512xf32>
    %56 = arith.addf %53, %55 : vector<2x512xf32>
    %57 = vector.extract_strided_slice %25 {offsets = [20, 0], sizes = [2, 512], strides = [1, 1]} : vector<24x512xf32> to vector<2x512xf32>
    %58 = arith.mulf %57, %21 : vector<2x512xf32>
    %59 = arith.addf %56, %58 : vector<2x512xf32>
    %60 = vector.extract_strided_slice %25 {offsets = [22, 0], sizes = [2, 512], strides = [1, 1]} : vector<24x512xf32> to vector<2x512xf32>
    %61 = arith.addf %59, %60 : vector<2x512xf32>
    %c2_27 = arith.constant 2 : index
    %c0_28 = arith.constant 0 : index
    %c0_29 = arith.constant 0 : index
    %62 = vector.load %arg6[%c2_27, %c0_28, %c0_29] : memref<3x2x512xf32, #tpu.memory_space<vmem>>, vector<1x2x512xf32>
    %63 = vector.shape_cast %62 : vector<1x2x512xf32> to vector<2x512xf32>
    %64 = vector.shape_cast %61 : vector<2x512xf32> to vector<1x2x512xf32>
    tpu.vector_store %arg6[%c2_27, %c0_28, %c0_29], %64 {strides = array<i32>} : memref<3x2x512xf32, #tpu.memory_space<vmem>>, vector<1x2x512xf32>,
    return
  }
  func.func @transform_0(%arg0: i32) -> (i32, i32) {
    %c0_i32 = arith.constant 0 : i32
    %c0_i32_0 = arith.constant 0 : i32
    %c0_i32_1 = arith.constant 0 : i32
    return %c0_i32, %c0_i32_0 : i32, i32
  }
  func.func @transform_1(%arg0: i32) -> (i32, i32) {
    %c0_i32 = arith.constant 0 : i32
    %c0_i32_0 = arith.constant 0 : i32
    %c0_i32_1 = arith.constant 0 : i32
    return %c0_i32, %c0_i32_0 : i32, i32
  }
  func.func @transform_2(%arg0: i32) -> (i32, i32, i32) {
    %c0_i32 = arith.constant 0 : i32
    %c0_i32_0 = arith.constant 0 : i32
    %c0_i32_1 = arith.constant 0 : i32
    return %c0_i32, %c0_i32_0, %arg0 : i32, i32, i32
  }
  func.func @transform_3(%arg0: i32) -> (i32, i32) {
    %c0_i32 = arith.constant 0 : i32
    %c0_i32_0 = arith.constant 0 : i32
    return %c0_i32, %arg0 : i32, i32
  }
  func.func @transform_4(%arg0: i32) -> (i32, i32) {
    %c0_i32 = arith.constant 0 : i32
    %c0_i32_0 = arith.constant 0 : i32
    return %c0_i32, %arg0 : i32, i32
  }
  func.func @transform_5(%arg0: i32) -> (i32, i32, i32) {
    %c0_i32 = arith.constant 0 : i32
    %c0_i32_0 = arith.constant 0 : i32
    %c0_i32_1 = arith.constant 0 : i32
    return %c0_i32, %c0_i32_0, %arg0 : i32, i32, i32
  }
}

</mosaic_0001>

<llo_original>
// kernel: mano_v2_forward.1
$region0: #{mano_v2_forward.1}
  #allocation0 [shape = 'u32[]', space=smem, size = 0x4, offset = 0x4, fixed_abs, tag = 'smem constant byte address 0x4 - core index']
  #allocation1 [shape = 'u32[144,128]{1,0:T(1,128)}', space=vmem, size = 0x12000, scoped, tag = 'internal scratch']
  %s0 = inlined_call_operand.vmem [shape: bf16[2,145], index: 0, kind: input, shape index: {}]
  %s1 = inlined_call_operand.vmem [shape: f32[24,16], index: 1, kind: input, shape index: {}]
  %s2 = inlined_call_operand.vmem [shape: s8[3,145,1024], index: 2, kind: input, shape index: {}]
  %s3 = inlined_call_operand.vmem [shape: f32[3,1024], index: 3, kind: input, shape index: {}]
  %s4 = inlined_call_operand.vmem [shape: bf16[16,1024], index: 4, kind: input, shape index: {}]
  %s5 = inlined_call_operand.vmem [shape: f32[3,2,1024], index: 5, kind: output, shape index: {}]
  %s6 = sld [smem:[#allocation0]]
  $region148: #{mano_v2_forward.1} parent=0
    _
  %s8 = ssub.s32 1, %s6
  %s9 = scalar_select 0, %s8, %s6
  $region1: #{mano_v2_forward.1} parent=0
    #allocation2 [shape = 'u8[466944]{0}', space=vmem, size = 0x72000, scoped, tag = 'input window, operand 2']
    #allocation3 [shape = 'u8[32768]{0}', space=vmem, size = 0x8000, scoped, tag = 'input window, operand 4']
    #allocation4 [shape = 'u8[24576]{0}', space=vmem, size = 0x6000, scoped, tag = 'output window, operand 0']
    loop: start=0, step=1, limit=4
    $region2: #{mano_v2_forward.1} parent=1 // loop_pre_header
      _
    $region3: #{mano_v2_forward.1} parent=1 // loop_header
      %s11 = sphi 0, %s15
      %p12 = scmp.ge.s32.totalorder %s11, 4
      %s19 = sphi 0, %s19
      %s21 = sphi 0, %s19
      %s22 = sphi 0, %s21
      %s36 = sphi 0, %s22
      %s40 = sphi 0, %s40
      %s42 = sphi 0, %s40
      %s43 = sphi 0, %s42
      %s57 = sphi 0, %s43
      %s63 = sphi 0, %s65
      %s66 = sphi 0, %s63
      %s67 = sphi 0, %s66
      %s83 = sphi 0, %s67
      %s89 = sphi 0, %s91
      %s92 = sphi 0, %s89
      %s93 = sphi 0, %s92
      %s109 = sphi 0, %s93
      %s115 = sphi 0, %s117
      %s118 = sphi 0, %s115
      %s119 = sphi 0, %s118
      %s135 = sphi 0, %s119
      %s141 = sphi 0, %s143
      %s144 = sphi 0, %s141
      %s145 = sphi 0, %s144
      %s161 = sphi 0, %s145
    $region4: #{mano_v2_forward.1} parent=1 // loop_header_branch
      %14 = sbr.rel (%p12) target = $region8
    $region5: #{mano_v2_forward.1} parent=1 // loop_body
      %s16 = ssub.s32 %s11, 1
      %s17 = ssub.s32 %s11, 2
      %s18 = sadd.s32 %s11, 1
      %s20 = sadd.s32 %s19, 1
      %p23 = scmp.eq.s32.totalorder %s11, 1
      %p24 = scmp.ne.s32.totalorder %s19, %s21
      %p25 = scmp.eq.s32.totalorder %s11, 0
      %p26 = por %p24, %p25
      %p27 = scmp.ne.s32.totalorder %s19, %s21
      %p28 = scmp.eq.s32.totalorder %s16, 1
      %p29 = por %p27, %p28
      %p30 = scmp.ne.s32.totalorder %s21, %s22
      %p31 = scmp.eq.s32.totalorder %s16, 0
      %p32 = por %p30, %p31
      %p33 = scmp.ne.s32.totalorder %s21, %s22
      %p34 = scmp.eq.s32.totalorder %s17, 1
      %p35 = por %p33, %p34
      %p37 = scmp.ne.s32.totalorder %s22, %s36
      %p38 = scmp.eq.s32.totalorder %s17, 0
      %p39 = por %p37, %p38
      %s41 = sadd.s32 %s40, 1
      %p44 = scmp.eq.s32.totalorder %s11, 1
      %p45 = scmp.ne.s32.totalorder %s40, %s42
      %p46 = scmp.eq.s32.totalorder %s11, 0
      %p47 = por %p45, %p46
      %p48 = scmp.ne.s32.totalorder %s40, %s42
      %p49 = scmp.eq.s32.totalorder %s16, 1
      %p50 = por %p48, %p49
      %p51 = scmp.ne.s32.totalorder %s42, %s43
      %p52 = scmp.eq.s32.totalorder %s16, 0
      %p53 = por %p51, %p52
      %p54 = scmp.ne.s32.totalorder %s42, %s43
      %p55 = scmp.eq.s32.totalorder %s17, 1
      %p56 = por %p54, %p55
      %p58 = scmp.ne.s32.totalorder %s43, %s57
      %p59 = scmp.eq.s32.totalorder %s17, 0
      %p60 = por %p58, %p59
      %s61 = ssub.s32 %s11, %s18
      %p62 = scmp.eq.s32.totalorder %s61, 0
      %s64 = sadd.s32 %s63, 1
      %s65 = scalar_select %p62, %s63, %s64
      %p68 = pneg %p62
      %p69 = scmp.eq.s32.totalorder %s11, 1
      %p70 = por %p68, %p69
      %p71 = scmp.ne.s32.totalorder %s63, %s66
      %p72 = scmp.eq.s32.totalorder %s11, 0
      %p73 = por %p71, %p72
      %p74 = scmp.ne.s32.totalorder %s63, %s66
      %p75 = scmp.eq.s32.totalorder %s16, 1
      %p76 = por %p74, %p75
      %p77 = scmp.ne.s32.totalorder %s66, %s67
      %p78 = scmp.eq.s32.totalorder %s16, 0
      %p79 = por %p77, %p78
      %p80 = scmp.ne.s32.totalorder %s66, %s67
      %p81 = scmp.eq.s32.totalorder %s17, 1
      %p82 = por %p80, %p81
      %p84 = scmp.ne.s32.totalorder %s67, %s83
      %p85 = scmp.eq.s32.totalorder %s17, 0
      %p86 = por %p84, %p85
      %s87 = ssub.s32 %s11, %s18
      %p88 = scmp.eq.s32.totalorder %s87, 0
      %s90 = sadd.s32 %s89, 1
      %s91 = scalar_select %p88, %s89, %s90
      %p94 = pneg %p88
      %p95 = scmp.eq.s32.totalorder %s11, 1
      %p96 = por %p94, %p95
      %p97 = scmp.ne.s32.totalorder %s89, %s92
      %p98 = scmp.eq.s32.totalorder %s11, 0
      %p99 = por %p97, %p98
      %p100 = scmp.ne.s32.totalorder %s89, %s92
      %p101 = scmp.eq.s32.totalorder %s16, 1
      %p102 = por %p100, %p101
      %p103 = scmp.ne.s32.totalorder %s92, %s93
      %p104 = scmp.eq.s32.totalorder %s16, 0
      %p105 = por %p103, %p104
      %p106 = scmp.ne.s32.totalorder %s92, %s93
      %p107 = scmp.eq.s32.totalorder %s17, 1
      %p108 = por %p106, %p107
      %p110 = scmp.ne.s32.totalorder %s93, %s109
      %p111 = scmp.eq.s32.totalorder %s17, 0
      %p112 = por %p110, %p111
      %s113 = ssub.s32 %s11, %s18
      %p114 = scmp.eq.s32.totalorder %s113, 0
      %s116 = sadd.s32 %s115, 1
      %s117 = scalar_select %p114, %s115, %s116
      %p120 = pneg %p114
      %p121 = scmp.eq.s32.totalorder %s11, 1
      %p122 = por %p120, %p121
      %p123 = scmp.ne.s32.totalorder %s115, %s118
      %p124 = scmp.eq.s32.totalorder %s11, 0
      %p125 = por %p123, %p124
      %p126 = scmp.ne.s32.totalorder %s115, %s118
      %p127 = scmp.eq.s32.totalorder %s16, 1
      %p128 = por %p126, %p127
      %p129 = scmp.ne.s32.totalorder %s118, %s119
      %p130 = scmp.eq.s32.totalorder %s16, 0
      %p131 = por %p129, %p130
      %p132 = scmp.ne.s32.totalorder %s118, %s119
      %p133 = scmp.eq.s32.totalorder %s17, 1
      %p134 = por %p132, %p133
      %p136 = scmp.ne.s32.totalorder %s119, %s135
      %p137 = scmp.eq.s32.totalorder %s17, 0
      %p138 = por %p136, %p137
      %s139 = ssub.s32 %s11, %s18
      %p140 = scmp.eq.s32.totalorder %s139, 0
      %s142 = sadd.s32 %s141, 1
      %s143 = scalar_select %p140, %s141, %s142
      %p146 = pneg %p140
      %p147 = scmp.eq.s32.totalorder %s11, 1
      %p148 = por %p146, %p147
      %p149 = scmp.ne.s32.totalorder %s141, %s144
      %p150 = scmp.eq.s32.totalorder %s11, 0
      %p151 = por %p149, %p150
      %p152 = scmp.ne.s32.totalorder %s141, %s144
      %p153 = scmp.eq.s32.totalorder %s16, 1
      %p154 = por %p152, %p153
      %p155 = scmp.ne.s32.totalorder %s144, %s145
      %p156 = scmp.eq.s32.totalorder %s16, 0
      %p157 = por %p155, %p156
      %p158 = scmp.ne.s32.totalorder %s144, %s145
      %p159 = scmp.eq.s32.totalorder %s17, 1
      %p160 = por %p158, %p159
      %p162 = scmp.ne.s32.totalorder %s145, %s161
      %p163 = scmp.eq.s32.totalorder %s17, 0
      %p164 = por %p162, %p163
      %p165 = scmp.le.s32.totalorder 1, %s11
      %p166 = scmp.lt.s32.totalorder %s11, 3
      %p167 = pnand %p165, %p166
      %p168 = pneg %p167
      // Predicated region
      $region9: #{mano_v2_forward.1} parent=5 // pred_check
        _
      $region10: #{mano_v2_forward.1} parent=5 // pred_check_branch
        %170 = sbr.rel (%p167) target = $region12
      $region11: #{mano_v2_forward.1} parent=5 // pred_region
        %s171 = ssub.s32 %s11, 1
        // Predicated region
        $region13: #{mano_v2_forward.1} parent=11 // pred_check
          %p172 = pneg %p32
        $region14: #{mano_v2_forward.1} parent=11 // pred_check_branch
          %174 = sbr.rel (%p172) target = $region16
        $region15: #{mano_v2_forward.1} parent=11 // pred_region
          _
        $region16: #{mano_v2_forward.1} parent=11 // pred_fallthru
          _
        // Predicated region
        $region17: #{mano_v2_forward.1} parent=11 // pred_check
          %p175 = pneg %p53
        $region18: #{mano_v2_forward.1} parent=11 // pred_check_branch
          %177 = sbr.rel (%p175) target = $region20
        $region19: #{mano_v2_forward.1} parent=11 // pred_region
          _
        $region20: #{mano_v2_forward.1} parent=11 // pred_fallthru
          _
      $region12: #{mano_v2_forward.1} parent=5 // pred_fallthru
        _
      %p178 = scmp.lt.s32.totalorder %s11, 2
      // Predicated region
      $region21: #{mano_v2_forward.1} parent=5 // pred_check
        %p179 = pneg %p178
      $region22: #{mano_v2_forward.1} parent=5 // pred_check_branch
        %181 = sbr.rel (%p179) target = $region24
      $region23: #{mano_v2_forward.1} parent=5 // pred_region
        // Predicated region
        $region25: #{mano_v2_forward.1} parent=23 // pred_check
          %p182 = pneg %p73
        $region26: #{mano_v2_forward.1} parent=23 // pred_check_branch
          %184 = sbr.rel (%p182) target = $region28
        $region27: #{mano_v2_forward.1} parent=23 // pred_region
          %s185 = sand.u32 %s63, 1
          %s186 = sand.u32 %s63, 1
          %s187 = smul.addr %s186, 456
          %s188 = scalar_lea.vmem [#allocation2], %s187
          %s189 = smul.u32 4, %s11
          %s190 = smul.addr %s189, 2
          %s191 = scalar_lea.vmem %s2, %s190
          // Predicated region
          $region29: #{mano_v2_forward.1} parent=27 // pred_check
            _
          $region30: #{mano_v2_forward.1} parent=27 // pred_check_branch
            %193 = sbr.rel (0) target = $region32
          $region31: #{mano_v2_forward.1} parent=27 // pred_region
            // Predicated region
            $region33: #{mano_v2_forward.1} parent=31 // pred_check
              _
            $region34: #{mano_v2_forward.1} parent=31 // pred_check_branch
              %195 = sbr.rel (0) target = $region36
            $region35: #{mano_v2_forward.1} parent=31 // pred_region
              // Predicated region
              $region48: #{mano_v2_forward.1} parent=35 // pred_check
                _
              $region49: #{mano_v2_forward.1} parent=35 // pred_check_branch
                %322 = sbr.rel (0) target = $region51
              $region50: #{mano_v2_forward.1} parent=35 // pred_region
                loop: start=0, step=1, limit=1
                $region52: #{mano_v2_forward.1} parent=50 // loop_pre_header
                  _
                $region53: #{mano_v2_forward.1} parent=50 // loop_header
                  %s324 = sphi 0, %s328
                  %p325 = scmp.ge.s32.totalorder %s324, 1
                  %s329 = sphi %s191, %s191
                  %s330 = sphi %s188, %s188
                $region54: #{mano_v2_forward.1} parent=50 // loop_header_branch
                  %327 = sbr.rel (%p325) target = $region58
                $region55: #{mano_v2_forward.1} parent=50 // loop_body
                  %v331 = vld [vmem:[%s329] sm:$0xff]
                  %332 = vst [vmem:[%s330] sm:$0xff] %v331
                  %v333 = vld [vmem:[%s329 + $0x10] sm:$0xff]
                  %334 = vst [vmem:[%s330 + $0x8] sm:$0xff] %v333
                  %v335 = vld [vmem:[%s329 + $0x20] sm:$0xff]
                  %336 = vst [vmem:[%s330 + $0x10] sm:$0xff] %v335
                  %v337 = vld [vmem:[%s329 + $0x30] sm:$0xff]
                  %338 = vst [vmem:[%s330 + $0x18] sm:$0xff] %v337
                  %v339 = vld [vmem:[%s329 + $0x40] sm:$0xff]
                  %340 = vst [vmem:[%s330 + $0x20] sm:$0xff] %v339
                  %v341 = vld [vmem:[%s329 + $0x50] sm:$0xff]
                  %342 = vst [vmem:[%s330 + $0x28] sm:$0xff] %v341
                  %v343 = vld [vmem:[%s329 + $0x60] sm:$0xff]
                  %344 = vst [vmem:[%s330 + $0x30] sm:$0xff] %v343
                  %v345 = vld [vmem:[%s329 + $0x70] sm:$0xff]
                  %346 = vst [vmem:[%s330 + $0x38] sm:$0xff] %v345
                  %v347 = vld [vmem:[%s329 + $0x80] sm:$0xff]
                  %348 = vst [vmem:[%s330 + $0x40] sm:$0xff] %v347
                  %v349 = vld [vmem:[%s329 + $0x90] sm:$0xff]
                  %350 = vst [vmem:[%s330 + $0x48] sm:$0xff] %v349
                  %v351 = vld [vmem:[%s329 + $0xa0] sm:$0xff]
                  %352 = vst [vmem:[%s330 + $0x50] sm:$0xff] %v351
                  %v353 = vld [vmem:[%s329 + $0xb0] sm:$0xff]
                  %354 = vst [vmem:[%s330 + $0x58] sm:$0xff] %v353
                  %v355 = vld [vmem:[%s329 + $0xc0] sm:$0xff]
                  %356 = vst [vmem:[%s330 + $0x60] sm:$0xff] %v355
                  %v357 = vld [vmem:[%s329 + $0xd0] sm:$0xff]
                  %358 = vst [vmem:[%s330 + $0x68] sm:$0xff] %v357
                  %v359 = vld [vmem:[%s329 + $0xe0] sm:$0xff]
                  %360 = vst [vmem:[%s330 + $0x70] sm:$0xff] %v359
                  %v361 = vld [vmem:[%s329 + $0xf0] sm:$0xff]
                  %362 = vst [vmem:[%s330 + $0x78] sm:$0xff] %v361
                  %v363 = vld [vmem:[%s329 + $0x100] sm:$0xff]
                  %364 = vst [vmem:[%s330 + $0x80] sm:$0xff] %v363
                  %v365 = vld [vmem:[%s329 + $0x110] sm:$0xff]
                  %366 = vst [vmem:[%s330 + $0x88] sm:$0xff] %v365
                  %v367 = vld [vmem:[%s329 + $0x120] sm:$0xff]
                  %368 = vst [vmem:[%s330 + $0x90] sm:$0xff] %v367
                  %v369 = vld [vmem:[%s329 + $0x130] sm:$0xff]
                  %370 = vst [vmem:[%s330 + $0x98] sm:$0xff] %v369
                  %v371 = vld [vmem:[%s329 + $0x140] sm:$0xff]
                  %372 = vst [vmem:[%s330 + $0xa0] sm:$0xff] %v371
                  %v373 = vld [vmem:[%s329 + $0x150] sm:$0xff]
                  %374 = vst [vmem:[%s330 + $0xa8] sm:$0xff] %v373
                  %v375 = vld [vmem:[%s329 + $0x160] sm:$0xff]
                  %376 = vst [vmem:[%s330 + $0xb0] sm:$0xff] %v375
                  %v377 = vld [vmem:[%s329 + $0x170] sm:$0xff]
                  %378 = vst [vmem:[%s330 + $0xb8] sm:$0xff] %v377
                  %v379 = vld [vmem:[%s329 + $0x180] sm:$0xff]
                  %380 = vst [vmem:[%s330 + $0xc0] sm:$0xff] %v379
                  %v381 = vld [vmem:[%s329 + $0x190] sm:$0xff]
                  %382 = vst [vmem:[%s330 + $0xc8] sm:$0xff] %v381
                  %v383 = vld [vmem:[%s329 + $0x1a0] sm:$0xff]
                  %384 = vst [vmem:[%s330 + $0xd0] sm:$0xff] %v383
                  %v385 = vld [vmem:[%s329 + $0x1b0] sm:$0xff]
                  %386 = vst [vmem:[%s330 + $0xd8] sm:$0xff] %v385
                  %v387 = vld [vmem:[%s329 + $0x1c0] sm:$0xff]
                  %388 = vst [vmem:[%s330 + $0xe0] sm:$0xff] %v387
                  %v389 = vld [vmem:[%s329 + $0x1d0] sm:$0xff]
                  %390 = vst [vmem:[%s330 + $0xe8] sm:$0xff] %v389
                  %v391 = vld [vmem:[%s329 + $0x1e0] sm:$0xff]
                  %392 = vst [vmem:[%s330 + $0xf0] sm:$0xff] %v391
                  %v393 = vld [vmem:[%s329 + $0x1f0] sm:$0xff]
                  %394 = vst [vmem:[%s330 + $0xf8] sm:$0xff] %v393
                  %v395 = vld [vmem:[%s329 + $0x200] sm:$0xff]
                  %396 = vst [vmem:[%s330 + $0x100] sm:$0xff] %v395
                  %v397 = vld [vmem:[%s329 + $0x210] sm:$0xff]
                  %398 = vst [vmem:[%s330 + $0x108] sm:$0xff] %v397
                  %v399 = vld [vmem:[%s329 + $0x220] sm:$0xff]
                  %400 = vst [vmem:[%s330 + $0x110] sm:$0xff] %v399
                  %v401 = vld [vmem:[%s329 + $0x230] sm:$0xff]
                  %402 = vst [vmem:[%s330 + $0x118] sm:$0xff] %v401
                  %v403 = vld [vmem:[%s329 + $0x240] sm:$0xff]
                  %404 = vst [vmem:[%s330 + $0x120] sm:$0xff] %v403
                  %v405 = vld [vmem:[%s329 + $0x250] sm:$0xff]
                  %406 = vst [vmem:[%s330 + $0x128] sm:$0xff] %v405
                  %v407 = vld [vmem:[%s329 + $0x260] sm:$0xff]
                  %408 = vst [vmem:[%s330 + $0x130] sm:$0xff] %v407
                  %v409 = vld [vmem:[%s329 + $0x270] sm:$0xff]
                  %410 = vst [vmem:[%s330 + $0x138] sm:$0xff] %v409
                  %v411 = vld [vmem:[%s329 + $0x280] sm:$0xff]
                  %412 = vst [vmem:[%s330 + $0x140] sm:$0xff] %v411
                  %v413 = vld [vmem:[%s329 + $0x290] sm:$0xff]
                  %414 = vst [vmem:[%s330 + $0x148] sm:$0xff] %v413
                  %v415 = vld [vmem:[%s329 + $0x2a0] sm:$0xff]
                  %416 = vst [vmem:[%s330 + $0x150] sm:$0xff] %v415
                  %v417 = vld [vmem:[%s329 + $0x2b0] sm:$0xff]
                  %418 = vst [vmem:[%s330 + $0x158] sm:$0xff] %v417
                  %v419 = vld [vmem:[%s329 + $0x2c0] sm:$0xff]
                  %420 = vst [vmem:[%s330 + $0x160] sm:$0xff] %v419
                  %v421 = vld [vmem:[%s329 + $0x2d0] sm:$0xff]
                  %422 = vst [vmem:[%s330 + $0x168] sm:$0xff] %v421
                  %v423 = vld [vmem:[%s329 + $0x2e0] sm:$0xff]
                  %424 = vst [vmem:[%s330 + $0x170] sm:$0xff] %v423
                  %v425 = vld [vmem:[%s329 + $0x2f0] sm:$0xff]
                  %426 = vst [vmem:[%s330 + $0x178] sm:$0xff] %v425
                  %v427 = vld [vmem:[%s329 + $0x300] sm:$0xff]
                  %428 = vst [vmem:[%s330 + $0x180] sm:$0xff] %v427
                  %v429 = vld [vmem:[%s329 + $0x310] sm:$0xff]
                  %430 = vst [vmem:[%s330 + $0x188] sm:$0xff] %v429
                  %v431 = vld [vmem:[%s329 + $0x320] sm:$0xff]
                  %432 = vst [vmem:[%s330 + $0x190] sm:$0xff] %v431
                  %v433 = vld [vmem:[%s329 + $0x330] sm:$0xff]
                  %434 = vst [vmem:[%s330 + $0x198] sm:$0xff] %v433
                  %v435 = vld [vmem:[%s329 + $0x340] sm:$0xff]
                  %436 = vst [vmem:[%s330 + $0x1a0] sm:$0xff] %v435
                  %v437 = vld [vmem:[%s329 + $0x350] sm:$0xff]
                  %438 = vst [vmem:[%s330 + $0x1a8] sm:$0xff] %v437
                  %v439 = vld [vmem:[%s329 + $0x360] sm:$0xff]
                  %440 = vst [vmem:[%s330 + $0x1b0] sm:$0xff] %v439
                  %v441 = vld [vmem:[%s329 + $0x370] sm:$0xff]
                  %442 = vst [vmem:[%s330 + $0x1b8] sm:$0xff] %v441
                  %v443 = vld [vmem:[%s329 + $0x380] sm:$0xff]
                  %444 = vst [vmem:[%s330 + $0x1c0] sm:$0xff] %v443
                $region56: #{mano_v2_forward.1} parent=50 // loop_footer
                  %s328 = sadd.s32 1, %s324
                $region57: #{mano_v2_forward.1} parent=50 // loop_footer_branch
                  %323 = sbr.rel target = $region53
                $region58: #{mano_v2_forward.1} parent=50 // loop_exit
                  _
              $region51: #{mano_v2_forward.1} parent=35 // pred_fallthru
                _
              // Predicated region
              $region59: #{mano_v2_forward.1} parent=35 // pred_check
                _
              $region60: #{mano_v2_forward.1} parent=35 // pred_check_branch
                %446 = sbr.rel target = $region62
              $region61: #{mano_v2_forward.1} parent=35 // pred_region
                _
              $region62: #{mano_v2_forward.1} parent=35 // pred_fallthru
                _
            $region36: #{mano_v2_forward.1} parent=31 // pred_fallthru
              _
            // Predicated region
            $region37: #{mano_v2_forward.1} parent=31 // pred_check
              _
            $region38: #{mano_v2_forward.1} parent=31 // pred_check_branch
              %197 = sbr.rel target = $region40
            $region39: #{mano_v2_forward.1} parent=31 // pred_region
              loop: start=0, step=1, limit=1
              $region41: #{mano_v2_forward.1} parent=39 // loop_pre_header
                _
              $region42: #{mano_v2_forward.1} parent=39 // loop_header
                %s200 = sphi 0, %s204
                %p201 = scmp.ge.s32.totalorder %s200, 1
                %s205 = sphi %s191, %s191
                %s206 = sphi %s188, %s188
              $region43: #{mano_v2_forward.1} parent=39 // loop_header_branch
                %203 = sbr.rel (%p201) target = $region47
              $region44: #{mano_v2_forward.1} parent=39 // loop_body
                %v207 = vld [vmem:[%s205] sm:$0xff]
                %208 = vst [vmem:[%s206] sm:$0xff] %v207
                %v209 = vld [vmem:[%s205 + $0x10] sm:$0xff]
                %210 = vst [vmem:[%s206 + $0x8] sm:$0xff] %v209
                %v211 = vld [vmem:[%s205 + $0x20] sm:$0xff]
                %212 = vst [vmem:[%s206 + $0x10] sm:$0xff] %v211
                %v213 = vld [vmem:[%s205 + $0x30] sm:$0xff]
                %214 = vst [vmem:[%s206 + $0x18] sm:$0xff] %v213
                %v215 = vld [vmem:[%s205 + $0x40] sm:$0xff]
                %216 = vst [vmem:[%s206 + $0x20] sm:$0xff] %v215
                %v217 = vld [vmem:[%s205 + $0x50] sm:$0xff]
                %218 = vst [vmem:[%s206 + $0x28] sm:$0xff] %v217
                %v219 = vld [vmem:[%s205 + $0x60] sm:$0xff]
                %220 = vst [vmem:[%s206 + $0x30] sm:$0xff] %v219
                %v221 = vld [vmem:[%s205 + $0x70] sm:$0xff]
                %222 = vst [vmem:[%s206 + $0x38] sm:$0xff] %v221
                %v223 = vld [vmem:[%s205 + $0x80] sm:$0xff]
                %224 = vst [vmem:[%s206 + $0x40] sm:$0xff] %v223
                %v225 = vld [vmem:[%s205 + $0x90] sm:$0xff]
                %226 = vst [vmem:[%s206 + $0x48] sm:$0xff] %v225
                %v227 = vld [vmem:[%s205 + $0xa0] sm:$0xff]
                %228 = vst [vmem:[%s206 + $0x50] sm:$0xff] %v227
                %v229 = vld [vmem:[%s205 + $0xb0] sm:$0xff]
                %230 = vst [vmem:[%s206 + $0x58] sm:$0xff] %v229
                %v231 = vld [vmem:[%s205 + $0xc0] sm:$0xff]
                %232 = vst [vmem:[%s206 + $0x60] sm:$0xff] %v231
                %v233 = vld [vmem:[%s205 + $0xd0] sm:$0xff]
                %234 = vst [vmem:[%s206 + $0x68] sm:$0xff] %v233
                %v235 = vld [vmem:[%s205 + $0xe0] sm:$0xff]
                %236 = vst [vmem:[%s206 + $0x70] sm:$0xff] %v235
                %v237 = vld [vmem:[%s205 + $0xf0] sm:$0xff]
                %238 = vst [vmem:[%s206 + $0x78] sm:$0xff] %v237
                %v239 = vld [vmem:[%s205 + $0x100] sm:$0xff]
                %240 = vst [vmem:[%s206 + $0x80] sm:$0xff] %v239
                %v241 = vld [vmem:[%s205 + $0x110] sm:$0xff]
                %242 = vst [vmem:[%s206 + $0x88] sm:$0xff] %v241
                %v243 = vld [vmem:[%s205 + $0x120] sm:$0xff]
                %244 = vst [vmem:[%s206 + $0x90] sm:$0xff] %v243
                %v245 = vld [vmem:[%s205 + $0x130] sm:$0xff]
                %246 = vst [vmem:[%s206 + $0x98] sm:$0xff] %v245
                %v247 = vld [vmem:[%s205 + $0x140] sm:$0xff]
                %248 = vst [vmem:[%s206 + $0xa0] sm:$0xff] %v247
                %v249 = vld [vmem:[%s205 + $0x150] sm:$0xff]
                %250 = vst [vmem:[%s206 + $0xa8] sm:$0xff] %v249
                %v251 = vld [vmem:[%s205 + $0x160] sm:$0xff]
                %252 = vst [vmem:[%s206 + $0xb0] sm:$0xff] %v251
                %v253 = vld [vmem:[%s205 + $0x170] sm:$0xff]
                %254 = vst [vmem:[%s206 + $0xb8] sm:$0xff] %v253
                %v255 = vld [vmem:[%s205 + $0x180] sm:$0xff]
                %256 = vst [vmem:[%s206 + $0xc0] sm:$0xff] %v255
                %v257 = vld [vmem:[%s205 + $0x190] sm:$0xff]
                %258 = vst [vmem:[%s206 + $0xc8] sm:$0xff] %v257
                %v259 = vld [vmem:[%s205 + $0x1a0] sm:$0xff]
                %260 = vst [vmem:[%s206 + $0xd0] sm:$0xff] %v259
                %v261 = vld [vmem:[%s205 + $0x1b0] sm:$0xff]
                %262 = vst [vmem:[%s206 + $0xd8] sm:$0xff] %v261
                %v263 = vld [vmem:[%s205 + $0x1c0] sm:$0xff]
                %264 = vst [vmem:[%s206 + $0xe0] sm:$0xff] %v263
                %v265 = vld [vmem:[%s205 + $0x1d0] sm:$0xff]
                %266 = vst [vmem:[%s206 + $0xe8] sm:$0xff] %v265
                %v267 = vld [vmem:[%s205 + $0x1e0] sm:$0xff]
                %268 = vst [vmem:[%s206 + $0xf0] sm:$0xff] %v267
                %v269 = vld [vmem:[%s205 + $0x1f0] sm:$0xff]
                %270 = vst [vmem:[%s206 + $0xf8] sm:$0xff] %v269
                %v271 = vld [vmem:[%s205 + $0x200] sm:$0xff]
                %272 = vst [vmem:[%s206 + $0x100] sm:$0xff] %v271
                %v273 = vld [vmem:[%s205 + $0x210] sm:$0xff]
                %274 = vst [vmem:[%s206 + $0x108] sm:$0xff] %v273
                %v275 = vld [vmem:[%s205 + $0x220] sm:$0xff]
                %276 = vst [vmem:[%s206 + $0x110] sm:$0xff] %v275
                %v277 = vld [vmem:[%s205 + $0x230] sm:$0xff]
                %278 = vst [vmem:[%s206 + $0x118] sm:$0xff] %v277
                %v279 = vld [vmem:[%s205 + $0x240] sm:$0xff]
                %280 = vst [vmem:[%s206 + $0x120] sm:$0xff] %v279
                %v281 = vld [vmem:[%s205 + $0x250] sm:$0xff]
                %282 = vst [vmem:[%s206 + $0x128] sm:$0xff] %v281
                %v283 = vld [vmem:[%s205 + $0x260] sm:$0xff]
                %284 = vst [vmem:[%s206 + $0x130] sm:$0xff] %v283
                %v285 = vld [vmem:[%s205 + $0x270] sm:$0xff]
                %286 = vst [vmem:[%s206 + $0x138] sm:$0xff] %v285
                %v287 = vld [vmem:[%s205 + $0x280] sm:$0xff]
                %288 = vst [vmem:[%s206 + $0x140] sm:$0xff] %v287
                %v289 = vld [vmem:[%s205 + $0x290] sm:$0xff]
                %290 = vst [vmem:[%s206 + $0x148] sm:$0xff] %v289
                %v291 = vld [vmem:[%s205 + $0x2a0] sm:$0xff]
                %292 = vst [vmem:[%s206 + $0x150] sm:$0xff] %v291
                %v293 = vld [vmem:[%s205 + $0x2b0] sm:$0xff]
                %294 = vst [vmem:[%s206 + $0x158] sm:$0xff] %v293
                %v295 = vld [vmem:[%s205 + $0x2c0] sm:$0xff]
                %296 = vst [vmem:[%s206 + $0x160] sm:$0xff] %v295
                %v297 = vld [vmem:[%s205 + $0x2d0] sm:$0xff]
                %298 = vst [vmem:[%s206 + $0x168] sm:$0xff] %v297
                %v299 = vld [vmem:[%s205 + $0x2e0] sm:$0xff]
                %300 = vst [vmem:[%s206 + $0x170] sm:$0xff] %v299
                %v301 = vld [vmem:[%s205 + $0x2f0] sm:$0xff]
                %302 = vst [vmem:[%s206 + $0x178] sm:$0xff] %v301
                %v303 = vld [vmem:[%s205 + $0x300] sm:$0xff]
                %304 = vst [vmem:[%s206 + $0x180] sm:$0xff] %v303
                %v305 = vld [vmem:[%s205 + $0x310] sm:$0xff]
                %306 = vst [vmem:[%s206 + $0x188] sm:$0xff] %v305
                %v307 = vld [vmem:[%s205 + $0x320] sm:$0xff]
                %308 = vst [vmem:[%s206 + $0x190] sm:$0xff] %v307
                %v309 = vld [vmem:[%s205 + $0x330] sm:$0xff]
                %310 = vst [vmem:[%s206 + $0x198] sm:$0xff] %v309
                %v311 = vld [vmem:[%s205 + $0x340] sm:$0xff]
                %312 = vst [vmem:[%s206 + $0x1a0] sm:$0xff] %v311
                %v313 = vld [vmem:[%s205 + $0x350] sm:$0xff]
                %314 = vst [vmem:[%s206 + $0x1a8] sm:$0xff] %v313
                %v315 = vld [vmem:[%s205 + $0x360] sm:$0xff]
                %316 = vst [vmem:[%s206 + $0x1b0] sm:$0xff] %v315
                %v317 = vld [vmem:[%s205 + $0x370] sm:$0xff]
                %318 = vst [vmem:[%s206 + $0x1b8] sm:$0xff] %v317
                %v319 = vld [vmem:[%s205 + $0x380] sm:$0xff]
                %320 = vst [vmem:[%s206 + $0x1c0] sm:$0xff] %v319
              $region45: #{mano_v2_forward.1} parent=39 // loop_footer
                %s204 = sadd.s32 1, %s200
              $region46: #{mano_v2_forward.1} parent=39 // loop_footer_branch
                %199 = sbr.rel target = $region42
              $region47: #{mano_v2_forward.1} parent=39 // loop_exit
                _
            $region40: #{mano_v2_forward.1} parent=31 // pred_fallthru
              _
          $region32: #{mano_v2_forward.1} parent=27 // pred_fallthru
            _
          %447 = vnop
        $region28: #{mano_v2_forward.1} parent=23 // pred_fallthru
          _
        // Predicated region
        $region63: #{mano_v2_forward.1} parent=23 // pred_check
          %p448 = pneg %p99
        $region64: #{mano_v2_forward.1} parent=23 // pred_check_branch
          %450 = sbr.rel (%p448) target = $region66
        $region65: #{mano_v2_forward.1} parent=23 // pred_region
          %s451 = smul.u32 4, %s11
          %p452 = scmp.lt.s32.totalorder %s451, 7
          %s453 = scalar_select %p452, %s451, 7
          %s454 = smul.addr %s453, 4
          %s455 = scalar_lea.vmem %s3, %s454
          %s456 = smul.u32 4, %s11
        $region66: #{mano_v2_forward.1} parent=23 // pred_fallthru
          _
        // Predicated region
        $region67: #{mano_v2_forward.1} parent=23 // pred_check
          %p457 = pneg %p125
        $region68: #{mano_v2_forward.1} parent=23 // pred_check_branch
          %459 = sbr.rel (%p457) target = $region70
        $region69: #{mano_v2_forward.1} parent=23 // pred_region
          %s460 = sand.u32 %s115, 1
          %s461 = sand.u32 %s115, 1
          %s462 = smul.addr %s461, 32
          %s463 = scalar_lea.vmem [#allocation3], %s462
          %s464 = smul.u32 4, %s11
          %s465 = smul.addr %s464, 4
          %s466 = scalar_lea.vmem %s4, %s465
          // Predicated region
          $region71: #{mano_v2_forward.1} parent=69 // pred_check
            _
          $region72: #{mano_v2_forward.1} parent=69 // pred_check_branch
            %468 = sbr.rel (0) target = $region74
          $region73: #{mano_v2_forward.1} parent=69 // pred_region
            // Predicated region
            $region75: #{mano_v2_forward.1} parent=73 // pred_check
              _
            $region76: #{mano_v2_forward.1} parent=73 // pred_check_branch
              %470 = sbr.rel (0) target = $region78
            $region77: #{mano_v2_forward.1} parent=73 // pred_region
              loop: start=0, step=1, limit=1
              $region79: #{mano_v2_forward.1} parent=77 // loop_pre_header
                _
              $region80: #{mano_v2_forward.1} parent=77 // loop_header
                %s472 = sphi 0, %s476
                %p473 = scmp.ge.s32.totalorder %s472, 1
                %s477 = sphi %s466, %s466
                %s478 = sphi %s463, %s463
              $region81: #{mano_v2_forward.1} parent=77 // loop_header_branch
                %475 = sbr.rel (%p473) target = $region85
              $region82: #{mano_v2_forward.1} parent=77 // loop_body
                %v479 = vld [vmem:[%s477] sm:$0xff]
                %480 = vst [vmem:[%s478] sm:$0xff] %v479
                %v481 = vld [vmem:[%s477 + $0x8] sm:$0xff]
                %482 = vst [vmem:[%s478 + $0x8] sm:$0xff] %v481
                %v483 = vld [vmem:[%s477 + $0x20] sm:$0xff]
                %484 = vst [vmem:[%s478 + $0x10] sm:$0xff] %v483
                %v485 = vld [vmem:[%s477 + $0x28] sm:$0xff]
                %486 = vst [vmem:[%s478 + $0x18] sm:$0xff] %v485
              $region83: #{mano_v2_forward.1} parent=77 // loop_footer
                %s476 = sadd.s32 1, %s472
              $region84: #{mano_v2_forward.1} parent=77 // loop_footer_branch
                %471 = sbr.rel target = $region80
              $region85: #{mano_v2_forward.1} parent=77 // loop_exit
                _
            $region78: #{mano_v2_forward.1} parent=73 // pred_fallthru
              _
            // Predicated region
            $region86: #{mano_v2_forward.1} parent=73 // pred_check
              _
            $region87: #{mano_v2_forward.1} parent=73 // pred_check_branch
              %488 = sbr.rel target = $region89
            $region88: #{mano_v2_forward.1} parent=73 // pred_region
              _
            $region89: #{mano_v2_forward.1} parent=73 // pred_fallthru
              _
          $region74: #{mano_v2_forward.1} parent=69 // pred_fallthru
            _
          %489 = vnop
        $region70: #{mano_v2_forward.1} parent=23 // pred_fallthru
          _
      $region24: #{mano_v2_forward.1} parent=5 // pred_fallthru
        _
      %p490 = scmp.le.s32.totalorder 1, %s11
      %p491 = scmp.lt.s32.totalorder %s11, 3
      %p492 = pnand %p490, %p491
      %p493 = pneg %p492
      // Predicated region
      $region90: #{mano_v2_forward.1} parent=5 // pred_check
        _
      $region91: #{mano_v2_forward.1} parent=5 // pred_check_branch
        %495 = sbr.rel (%p492) target = $region93
      $region92: #{mano_v2_forward.1} parent=5 // pred_region
        %s496 = ssub.s32 %s11, 1
        %s497 = sand.u32 %s66, 1
        %s498 = sand.u32 %s66, 1
        %s499 = smul.addr %s498, 456
        %s500 = scalar_lea.vmem [#allocation2], %s499
        // Predicated region
        $region94: #{mano_v2_forward.1} parent=92 // pred_check
          %p501 = pneg %p79
        $region95: #{mano_v2_forward.1} parent=92 // pred_check_branch
          %503 = sbr.rel (%p501) target = $region97
        $region96: #{mano_v2_forward.1} parent=92 // pred_region
          _
        $region97: #{mano_v2_forward.1} parent=92 // pred_fallthru
          _
        %s504 = sand.u32 %s118, 1
        %s505 = sand.u32 %s118, 1
        %s506 = smul.addr %s505, 32
        %s507 = scalar_lea.vmem [#allocation3], %s506
        // Predicated region
        $region98: #{mano_v2_forward.1} parent=92 // pred_check
          %p508 = pneg %p131
        $region99: #{mano_v2_forward.1} parent=92 // pred_check_branch
          %510 = sbr.rel (%p508) target = $region101
        $region100: #{mano_v2_forward.1} parent=92 // pred_region
          _
        $region101: #{mano_v2_forward.1} parent=92 // pred_fallthru
          _
        %p511 = pneg %p32
        %p512 = pneg %p29
        %p513 = pneg %p53
        %p514 = pneg %p50
        %s515 = sand.u32 %s66, 1
        %s516 = sand.u32 %s66, 1
        %s517 = smul.addr %s516, 456
        %s518 = scalar_lea.vmem [#allocation2], %s517
        %p519 = pneg %p79
        %p520 = pneg %p76
        %s521 = smul.u32 4, %s16
        %p522 = scmp.lt.s32.totalorder %s521, 7
        %s523 = scalar_select %p522, %s521, 7
        %s524 = smul.addr %s523, 4
        %s525 = scalar_lea.vmem %s3, %s524
        %p526 = pneg %p105
        %p527 = pneg %p102
        %s528 = sand.u32 %s118, 1
        %s529 = sand.u32 %s118, 1
        %s530 = smul.addr %s529, 32
        %s531 = scalar_lea.vmem [#allocation3], %s530
        %p532 = pneg %p131
        %p533 = pneg %p128
        %p534 = pneg %p157
        %p535 = pneg %p154
        %s536 = sand.u32 %s144, 1
        %s537 = sand.u32 %s144, 1
        %s538 = smul.addr %s537, 24
        %s539 = scalar_lea.vmem [#allocation4], %s538
        %s540 = smul.u32 4, %s16
        %s541 = smul.u32 4, %s16
        %p542 = scmp.lt.s32.totalorder %s541, 7
        %s543 = scalar_select %p542, %s541, 7
        %s544 = smul.addr %s543, 4
        %s545 = scalar_lea.vmem %s3, %s544
        %s546 = smul.u32 4, %s16
        %s547 = smul.u32 4, %s16
        %s548 = smul.u32 4, %s16
        %v550 = vld [vmem:[%s0] sm:$0x3]
        %v551 = vld [vmem:[%s500] sm:$0xff]
        %v552 = vld [vmem:[%s500 + $0x8] sm:$0xff]
        %v553 = vld [vmem:[%s500 + $0x10] sm:$0xff]
        %v554 = vld [vmem:[%s500 + $0x18] sm:$0xff]
        %v555 = vld [vmem:[%s500 + $0x20] sm:$0xff]
        %v556 = vld [vmem:[%s500 + $0x28] sm:$0xff]
        %v557 = vld [vmem:[%s500 + $0x30] sm:$0xff]
        %v558 = vld [vmem:[%s500 + $0x38] sm:$0xff]
        %v559 = vld [vmem:[%s500 + $0x40] sm:$0xff]
        %v560 = vld [vmem:[%s500 + $0x48] sm:$0xff]
        %v561 = vld [vmem:[%s500 + $0x50] sm:$0xff]
        %v562 = vld [vmem:[%s500 + $0x58] sm:$0xff]
        %v563 = vld [vmem:[%s500 + $0x60] sm:$0xff]
        %v564 = vld [vmem:[%s500 + $0x68] sm:$0xff]
        %v565 = vld [vmem:[%s500 + $0x70] sm:$0xff]
        %v566 = vld [vmem:[%s500 + $0x78] sm:$0xff]
        %v567 = vld [vmem:[%s500 + $0x80] sm:$0xff]
        %v568 = vld [vmem:[%s500 + $0x88] sm:$0xff]
        %v569 = vld [vmem:[%s500 + $0x90] sm:$0x55]
        %v570 = vunpack.c.l.s8.bf16 %v551
        %v571 = vunpack.c.h.s8.bf16 %v551
        %v572 = vunpack.c.l.s8.bf16 %v552
        %v573 = vunpack.c.h.s8.bf16 %v552
        %v574 = vunpack.c.l.s8.bf16 %v553
        %v575 = vunpack.c.h.s8.bf16 %v553
        %v576 = vunpack.c.l.s8.bf16 %v554
        %v577 = vunpack.c.h.s8.bf16 %v554
        %v578 = vunpack.c.l.s8.bf16 %v555
        %v579 = vunpack.c.h.s8.bf16 %v555
        %v580 = vunpack.c.l.s8.bf16 %v556
        %v581 = vunpack.c.h.s8.bf16 %v556
        %v582 = vunpack.c.l.s8.bf16 %v557
        %v583 = vunpack.c.h.s8.bf16 %v557
        %v584 = vunpack.c.l.s8.bf16 %v558
        %v585 = vunpack.c.h.s8.bf16 %v558
        %v586 = vunpack.c.l.s8.bf16 %v559
        %v587 = vunpack.c.h.s8.bf16 %v559
        %v588 = vunpack.c.l.s8.bf16 %v560
        %v589 = vunpack.c.h.s8.bf16 %v560
        %v590 = vunpack.c.l.s8.bf16 %v561
        %v591 = vunpack.c.h.s8.bf16 %v561
        %v592 = vunpack.c.l.s8.bf16 %v562
        %v593 = vunpack.c.h.s8.bf16 %v562
        %v594 = vunpack.c.l.s8.bf16 %v563
        %v595 = vunpack.c.h.s8.bf16 %v563
        %v596 = vunpack.c.l.s8.bf16 %v564
        %v597 = vunpack.c.h.s8.bf16 %v564
        %v598 = vunpack.c.l.s8.bf16 %v565
        %v599 = vunpack.c.h.s8.bf16 %v565
        %v600 = vunpack.c.l.s8.bf16 %v566
        %v601 = vunpack.c.h.s8.bf16 %v566
        %v602 = vunpack.c.l.s8.bf16 %v567
        %v603 = vunpack.c.h.s8.bf16 %v567
        %v604 = vunpack.c.l.s8.bf16 %v568
        %v605 = vunpack.c.h.s8.bf16 %v568
        %v606 = vunpack.c.l.s8.bf16 %v569
        %v607 = vunpack.c.h.s8.bf16 %v569
        %v608 = vld [vmem:[%s545] ss:$4 sm:$0xf]
        %v610 = vlaneseq
        %v611 = vshrl.u32 %v610, 7
        %v612 = vsub.s32 0, %v611
        %v613 = vrot.slane %v608, %v612
        %v614 = vlaneseq
        %v615 = vshrl.u32 %v614, 7
        %v616 = vsub.s32 1, %v615
        %v617 = vrot.slane %v608, %v616
        %v618 = vlaneseq
        %v619 = vshrl.u32 %v618, 7
        %v620 = vsub.s32 2, %v619
        %v621 = vrot.slane %v608, %v620
        %v622 = vlaneseq
        %v623 = vshrl.u32 %v622, 7
        %v624 = vsub.s32 3, %v623
        %v625 = vrot.slane %v608, %v624
        %v632 = vunpack.c.l.s4 1966171168
        %v633 = vunpack.c.0.s8 %v632
        %v634 = vlaneseq
        %v635 = vshrl.u32 %v634, 7
        %v636 = vsub.s32 %v633, %v635
        %v637 = vrot.slane %v550, %v636
        %v638 = vcombine.high %v637, %v637
        %v640 = vunpack.c.l.s4 1966171168
        %v641 = vunpack.c.0.s8 %v640
        %v642 = vlaneseq
        %v643 = vshrl.u32 %v642, 7
        %v644 = vsub.s32 %v641, %v643
        %v645 = vrot.slane %v637, %v644
        %v647 = vunpack.c.l.s4 1966171168
        %v648 = vunpack.c.0.s8 %v647
        %v649 = vlaneseq
        %v650 = vshrl.u32 %v649, 7
        %v651 = vsub.s32 %v648, %v650
        %v652 = vrot.slane %v638, %v651
        %v692 = vunpack.c.l.b16 %v570
        %v693 = vunpack.c.h.b16 %v570
        %v694 = vunpack.c.l.b16 %v571
        %v695 = vunpack.c.h.b16 %v571
        %v696 = vunpack.c.l.b16 %v572
        %v697 = vunpack.c.h.b16 %v572
        %v698 = vunpack.c.l.b16 %v573
        %v699 = vunpack.c.h.b16 %v573
        %v700 = vunpack.c.l.b16 %v574
        %v701 = vunpack.c.h.b16 %v574
        %v702 = vunpack.c.l.b16 %v575
        %v703 = vunpack.c.h.b16 %v575
        %v704 = vunpack.c.l.b16 %v576
        %v705 = vunpack.c.h.b16 %v576
        %v706 = vunpack.c.l.b16 %v577
        %v707 = vunpack.c.h.b16 %v577
        %v708 = vunpack.c.l.b16 %v578
        %v709 = vunpack.c.h.b16 %v578
        %v710 = vunpack.c.l.b16 %v579
        %v711 = vunpack.c.h.b16 %v579
        %v712 = vunpack.c.l.b16 %v580
        %v713 = vunpack.c.h.b16 %v580
        %v714 = vunpack.c.l.b16 %v581
        %v715 = vunpack.c.h.b16 %v581
        %v716 = vunpack.c.l.b16 %v582
        %v717 = vunpack.c.h.b16 %v582
        %v718 = vunpack.c.l.b16 %v583
        %v719 = vunpack.c.h.b16 %v583
        %v720 = vunpack.c.l.b16 %v584
        %v721 = vunpack.c.h.b16 %v584
        %v722 = vunpack.c.l.b16 %v585
        %v723 = vunpack.c.h.b16 %v585
        %v724 = vunpack.c.l.b16 %v586
        %v725 = vunpack.c.h.b16 %v586
        %v726 = vunpack.c.l.b16 %v587
        %v727 = vunpack.c.h.b16 %v587
        %v728 = vunpack.c.l.b16 %v588
        %v729 = vunpack.c.h.b16 %v588
        %v730 = vunpack.c.l.b16 %v589
        %v731 = vunpack.c.h.b16 %v589
        %v732 = vunpack.c.l.b16 %v590
        %v733 = vunpack.c.h.b16 %v590
        %v734 = vunpack.c.l.b16 %v591
        %v735 = vunpack.c.h.b16 %v591
        %v736 = vunpack.c.l.b16 %v592
        %v737 = vunpack.c.h.b16 %v592
        %v738 = vunpack.c.l.b16 %v593
        %v739 = vunpack.c.h.b16 %v593
        %v740 = vunpack.c.l.b16 %v594
        %v741 = vunpack.c.h.b16 %v594
        %v742 = vunpack.c.l.b16 %v595
        %v743 = vunpack.c.h.b16 %v595
        %v744 = vunpack.c.l.b16 %v596
        %v745 = vunpack.c.h.b16 %v596
        %v746 = vunpack.c.l.b16 %v597
        %v747 = vunpack.c.h.b16 %v597
        %v748 = vunpack.c.l.b16 %v598
        %v749 = vunpack.c.h.b16 %v598
        %v750 = vunpack.c.l.b16 %v599
        %v751 = vunpack.c.h.b16 %v599
        %v752 = vunpack.c.l.b16 %v600
        %v753 = vunpack.c.h.b16 %v600
        %v754 = vunpack.c.l.b16 %v601
        %v755 = vunpack.c.h.b16 %v601
        %v756 = vunpack.c.l.b16 %v602
        %v757 = vunpack.c.h.b16 %v602
        %v758 = vunpack.c.l.b16 %v603
        %v759 = vunpack.c.h.b16 %v603
        %v760 = vunpack.c.l.b16 %v604
        %v761 = vunpack.c.h.b16 %v604
        %v762 = vunpack.c.l.b16 %v605
        %v763 = vunpack.c.h.b16 %v605
        %v764 = vunpack.c.l.b16 %v606
        %v765 = vunpack.c.h.b16 %v606
        %v766 = vunpack.c.l.b16 %v607
        %v767 = vunpack.c.h.b16 %v607
        %v768 = vpack.c.b16 %v696, %v692
        %v769 = vpack.c.b16 %v697, %v693
        %v770 = vpack.c.b16 %v698, %v694
        %v771 = vpack.c.b16 %v699, %v695
        %v772 = vpack.c.b16 %v704, %v700
        %v773 = vpack.c.b16 %v705, %v701
        %v774 = vpack.c.b16 %v706, %v702
        %v775 = vpack.c.b16 %v707, %v703
        %v776 = vpack.c.b16 %v712, %v708
        %v777 = vpack.c.b16 %v713, %v709
        %v778 = vpack.c.b16 %v714, %v710
        %v779 = vpack.c.b16 %v715, %v711
        %v780 = vpack.c.b16 %v720, %v716
        %v781 = vpack.c.b16 %v721, %v717
        %v782 = vpack.c.b16 %v722, %v718
        %v783 = vpack.c.b16 %v723, %v719
        %v784 = vpack.c.b16 %v728, %v724
        %v785 = vpack.c.b16 %v729, %v725
        %v786 = vpack.c.b16 %v730, %v726
        %v787 = vpack.c.b16 %v731, %v727
        %v788 = vpack.c.b16 %v736, %v732
        %v789 = vpack.c.b16 %v737, %v733
        %v790 = vpack.c.b16 %v738, %v734
        %v791 = vpack.c.b16 %v739, %v735
        %v792 = vpack.c.b16 %v744, %v740
        %v793 = vpack.c.b16 %v745, %v741
        %v794 = vpack.c.b16 %v746, %v742
        %v795 = vpack.c.b16 %v747, %v743
        %v796 = vpack.c.b16 %v752, %v748
        %v797 = vpack.c.b16 %v753, %v749
        %v798 = vpack.c.b16 %v754, %v750
        %v799 = vpack.c.b16 %v755, %v751
        %v800 = vpack.c.b16 %v760, %v756
        %v801 = vpack.c.b16 %v761, %v757
        %v802 = vpack.c.b16 %v762, %v758
        %v803 = vpack.c.b16 %v763, %v759
        %v804 = vpack.c.b16 %v764, %v764
        %v805 = vpack.c.b16 %v765, %v765
        %v806 = vpack.c.b16 %v766, %v766
        %v807 = vpack.c.b16 %v767, %v767
        %vm844 = vcmask 138240
        %v846 = vsel %vm844, %v652, 0
        %vm848 = vcmask 1040384
        %v849 = vsel 0, 4294967295, 65535
        %v850 = vsel %vm848, %v849, 0
        %v852 = vand.u32 %v804, %v850
        %v855 = vand.u32 %v805, %v850
        %v858 = vand.u32 %v806, %v850
        %v861 = vand.u32 %v807, %v850
        %863 = vmatprep.subr.bf16.mxu0 %v769
        %864 = vmatpush1.bf16.msra.mxu0 %v768
        %865 = vmatprep.subr.bf16.mxu0 %v773
        %866 = vmatpush1.bf16.msra.mxu0 %v772
        %867 = vmatprep.subr.bf16.mxu0 %v777
        %868 = vmatpush1.bf16.msra.mxu0 %v776
        %869 = vmatprep.subr.bf16.mxu0 %v781
        %870 = vmatpush1.bf16.msra.mxu0 %v780
        %871 = vmatprep.subr.bf16.mxu0 %v785
        %872 = vmatpush1.bf16.msra.mxu0 %v784
        %873 = vmatprep.subr.bf16.mxu0 %v789
        %874 = vmatpush1.bf16.msra.mxu0 %v788
        %875 = vmatprep.subr.bf16.mxu0 %v793
        %876 = vmatpush1.bf16.msra.mxu0 %v792
        %877 = vmatprep.subr.bf16.mxu0 %v797
        %878 = vmatpush1.bf16.msra.mxu0 %v796
        %879 = vmatprep.subr.bf16.mxu0 %v801
        %880 = vmatpush1.bf16.msra.mxu0 %v800
        %881 = vmatprep.subr.bf16.mxu0 %v855
        %882 = vmatpush1.bf16.msra.mxu0 %v852
        %883 = vmatprep.subr.bf16.mxu0 0
        %884 = vmatpush1.bf16.msra.mxu0 0
        %885 = vmatprep.subr.bf16.mxu0 0
        %886 = vmatpush1.bf16.msra.mxu0 0
        %887 = vmatprep.subr.bf16.mxu0 0
        %888 = vmatpush1.bf16.msra.mxu0 0
        %889 = vmatprep.subr.bf16.mxu0 0
        %890 = vmatpush1.bf16.msra.mxu0 0
        %891 = vmatprep.subr.bf16.mxu0 0
        %892 = vmatpush1.bf16.msra.mxu0 0
        %893 = vmatprep.subr.bf16.mxu0 0
        %894 = vmatpush1.bf16.msra.mxu0 0
        %895 = vmatprep.mubr.bf16.mxu0 %v846
        %896 = vmatmul.mubr.bf16.gmra.mrb[0].mxu0 %v645
        %v897 = vpop.f32.mrb[0].mxu0
        %v898 = vadd.f32 %v613, %v897
        %v899 = vpop.f32.mrb[0].mxu0
        %v900 = vadd.f32 %v617, %v899
        %v901 = vpop.f32.mrb[0].mxu0
        %v902 = vpop.f32.mrb[0].mxu0
        %903 = vdwg.mxu0
        %904 = vmatprep.subr.bf16.mxu0 %v771
        %905 = vmatpush1.bf16.msra.mxu0 %v770
        %906 = vmatprep.subr.bf16.mxu0 %v775
        %907 = vmatpush1.bf16.msra.mxu0 %v774
        %908 = vmatprep.subr.bf16.mxu0 %v779
        %909 = vmatpush1.bf16.msra.mxu0 %v778
        %910 = vmatprep.subr.bf16.mxu0 %v783
        %911 = vmatpush1.bf16.msra.mxu0 %v782
        %912 = vmatprep.subr.bf16.mxu0 %v787
        %913 = vmatpush1.bf16.msra.mxu0 %v786
        %914 = vmatprep.subr.bf16.mxu0 %v791
        %915 = vmatpush1.bf16.msra.mxu0 %v790
        %916 = vmatprep.subr.bf16.mxu0 %v795
        %917 = vmatpush1.bf16.msra.mxu0 %v794
        %918 = vmatprep.subr.bf16.mxu0 %v799
        %919 = vmatpush1.bf16.msra.mxu0 %v798
        %920 = vmatprep.subr.bf16.mxu0 %v803
        %921 = vmatpush1.bf16.msra.mxu0 %v802
        %922 = vmatprep.subr.bf16.mxu0 %v861
        %923 = vmatpush1.bf16.msra.mxu0 %v858
        %924 = vmatprep.subr.bf16.mxu0 0
        %925 = vmatpush1.bf16.msra.mxu0 0
        %926 = vmatprep.subr.bf16.mxu0 0
        %927 = vmatpush1.bf16.msra.mxu0 0
        %928 = vmatprep.subr.bf16.mxu0 0
        %929 = vmatpush1.bf16.msra.mxu0 0
        %930 = vmatprep.subr.bf16.mxu0 0
        %931 = vmatpush1.bf16.msra.mxu0 0
        %932 = vmatprep.subr.bf16.mxu0 0
        %933 = vmatpush1.bf16.msra.mxu0 0
        %934 = vmatprep.subr.bf16.mxu0 0
        %935 = vmatpush1.bf16.msra.mxu0 0
        %936 = vmatprep.mubr.bf16.mxu0 %v846
        %937 = vmatmul.mubr.bf16.gmra.mrb[0].mxu0 %v645
        %v938 = vpop.f32.mrb[0].mxu0
        %v939 = vadd.f32 %v621, %v938
        %v940 = vpop.f32.mrb[0].mxu0
        %v941 = vadd.f32 %v625, %v940
        %v942 = vpop.f32.mrb[0].mxu0
        %v943 = vpop.f32.mrb[0].mxu0
        %944 = vdwg.mxu0
        %s945 = scalar_lea.vmem %s500, 152 [#allocation2]
        %v946 = vld [vmem:[%s945] sm:$0xff]
        %v947 = vld [vmem:[%s945 + $0x8] sm:$0xff]
        %v948 = vld [vmem:[%s945 + $0x10] sm:$0xff]
        %v949 = vld [vmem:[%s945 + $0x18] sm:$0xff]
        %v950 = vld [vmem:[%s945 + $0x20] sm:$0xff]
        %v951 = vld [vmem:[%s945 + $0x28] sm:$0xff]
        %v952 = vld [vmem:[%s945 + $0x30] sm:$0xff]
        %v953 = vld [vmem:[%s945 + $0x38] sm:$0xff]
        %v954 = vld [vmem:[%s945 + $0x40] sm:$0xff]
        %v955 = vld [vmem:[%s945 + $0x48] sm:$0xff]
        %v956 = vld [vmem:[%s945 + $0x50] sm:$0xff]
        %v957 = vld [vmem:[%s945 + $0x58] sm:$0xff]
        %v958 = vld [vmem:[%s945 + $0x60] sm:$0xff]
        %v959 = vld [vmem:[%s945 + $0x68] sm:$0xff]
        %v960 = vld [vmem:[%s945 + $0x70] sm:$0xff]
        %v961 = vld [vmem:[%s945 + $0x78] sm:$0xff]
        %v962 = vld [vmem:[%s945 + $0x80] sm:$0xff]
        %v963 = vld [vmem:[%s945 + $0x88] sm:$0xff]
        %v964 = vld [vmem:[%s945 + $0x90] sm:$0x55]
        %v965 = vunpack.c.l.s8.bf16 %v946
        %v966 = vunpack.c.h.s8.bf16 %v946
        %v967 = vunpack.c.l.s8.bf16 %v947
        %v968 = vunpack.c.h.s8.bf16 %v947
        %v969 = vunpack.c.l.s8.bf16 %v948
        %v970 = vunpack.c.h.s8.bf16 %v948
        %v971 = vunpack.c.l.s8.bf16 %v949
        %v972 = vunpack.c.h.s8.bf16 %v949
        %v973 = vunpack.c.l.s8.bf16 %v950
        %v974 = vunpack.c.h.s8.bf16 %v950
        %v975 = vunpack.c.l.s8.bf16 %v951
        %v976 = vunpack.c.h.s8.bf16 %v951
        %v977 = vunpack.c.l.s8.bf16 %v952
        %v978 = vunpack.c.h.s8.bf16 %v952
        %v979 = vunpack.c.l.s8.bf16 %v953
        %v980 = vunpack.c.h.s8.bf16 %v953
        %v981 = vunpack.c.l.s8.bf16 %v954
        %v982 = vunpack.c.h.s8.bf16 %v954
        %v983 = vunpack.c.l.s8.bf16 %v955
        %v984 = vunpack.c.h.s8.bf16 %v955
        %v985 = vunpack.c.l.s8.bf16 %v956
        %v986 = vunpack.c.h.s8.bf16 %v956
        %v987 = vunpack.c.l.s8.bf16 %v957
        %v988 = vunpack.c.h.s8.bf16 %v957
        %v989 = vunpack.c.l.s8.bf16 %v958
        %v990 = vunpack.c.h.s8.bf16 %v958
        %v991 = vunpack.c.l.s8.bf16 %v959
        %v992 = vunpack.c.h.s8.bf16 %v959
        %v993 = vunpack.c.l.s8.bf16 %v960
        %v994 = vunpack.c.h.s8.bf16 %v960
        %v995 = vunpack.c.l.s8.bf16 %v961
        %v996 = vunpack.c.h.s8.bf16 %v961
        %v997 = vunpack.c.l.s8.bf16 %v962
        %v998 = vunpack.c.h.s8.bf16 %v962
        %v999 = vunpack.c.l.s8.bf16 %v963
        %v1000 = vunpack.c.h.s8.bf16 %v963
        %v1001 = vunpack.c.l.s8.bf16 %v964
        %v1002 = vunpack.c.h.s8.bf16 %v964
        %s1003 = scalar_lea.vmem %s545, 1
        %v1004 = vld [vmem:[%s1003] ss:$4 sm:$0xf]
        %v1006 = vlaneseq
        %v1007 = vshrl.u32 %v1006, 7
        %v1008 = vsub.s32 0, %v1007
        %v1009 = vrot.slane %v1004, %v1008
        %v1010 = vlaneseq
        %v1011 = vshrl.u32 %v1010, 7
        %v1012 = vsub.s32 1, %v1011
        %v1013 = vrot.slane %v1004, %v1012
        %v1014 = vlaneseq
        %v1015 = vshrl.u32 %v1014, 7
        %v1016 = vsub.s32 2, %v1015
        %v1017 = vrot.slane %v1004, %v1016
        %v1018 = vlaneseq
        %v1019 = vshrl.u32 %v1018, 7
        %v1020 = vsub.s32 3, %v1019
        %v1021 = vrot.slane %v1004, %v1020
        %v1064 = vunpack.c.l.b16 %v965
        %v1065 = vunpack.c.h.b16 %v965
        %v1066 = vunpack.c.l.b16 %v966
        %v1067 = vunpack.c.h.b16 %v966
        %v1068 = vunpack.c.l.b16 %v967
        %v1069 = vunpack.c.h.b16 %v967
        %v1070 = vunpack.c.l.b16 %v968
        %v1071 = vunpack.c.h.b16 %v968
        %v1072 = vunpack.c.l.b16 %v969
        %v1073 = vunpack.c.h.b16 %v969
        %v1074 = vunpack.c.l.b16 %v970
        %v1075 = vunpack.c.h.b16 %v970
        %v1076 = vunpack.c.l.b16 %v971
        %v1077 = vunpack.c.h.b16 %v971
        %v1078 = vunpack.c.l.b16 %v972
        %v1079 = vunpack.c.h.b16 %v972
        %v1080 = vunpack.c.l.b16 %v973
        %v1081 = vunpack.c.h.b16 %v973
        %v1082 = vunpack.c.l.b16 %v974
        %v1083 = vunpack.c.h.b16 %v974
        %v1084 = vunpack.c.l.b16 %v975
        %v1085 = vunpack.c.h.b16 %v975
        %v1086 = vunpack.c.l.b16 %v976
        %v1087 = vunpack.c.h.b16 %v976
        %v1088 = vunpack.c.l.b16 %v977
        %v1089 = vunpack.c.h.b16 %v977
        %v1090 = vunpack.c.l.b16 %v978
        %v1091 = vunpack.c.h.b16 %v978
        %v1092 = vunpack.c.l.b16 %v979
        %v1093 = vunpack.c.h.b16 %v979
        %v1094 = vunpack.c.l.b16 %v980
        %v1095 = vunpack.c.h.b16 %v980
        %v1096 = vunpack.c.l.b16 %v981
        %v1097 = vunpack.c.h.b16 %v981
        %v1098 = vunpack.c.l.b16 %v982
        %v1099 = vunpack.c.h.b16 %v982
        %v1100 = vunpack.c.l.b16 %v983
        %v1101 = vunpack.c.h.b16 %v983
        %v1102 = vunpack.c.l.b16 %v984
        %v1103 = vunpack.c.h.b16 %v984
        %v1104 = vunpack.c.l.b16 %v985
        %v1105 = vunpack.c.h.b16 %v985
        %v1106 = vunpack.c.l.b16 %v986
        %v1107 = vunpack.c.h.b16 %v986
        %v1108 = vunpack.c.l.b16 %v987
        %v1109 = vunpack.c.h.b16 %v987
        %v1110 = vunpack.c.l.b16 %v988
        %v1111 = vunpack.c.h.b16 %v988
        %v1112 = vunpack.c.l.b16 %v989
        %v1113 = vunpack.c.h.b16 %v989
        %v1114 = vunpack.c.l.b16 %v990
        %v1115 = vunpack.c.h.b16 %v990
        %v1116 = vunpack.c.l.b16 %v991
        %v1117 = vunpack.c.h.b16 %v991
        %v1118 = vunpack.c.l.b16 %v992
        %v1119 = vunpack.c.h.b16 %v992
        %v1120 = vunpack.c.l.b16 %v993
        %v1121 = vunpack.c.h.b16 %v993
        %v1122 = vunpack.c.l.b16 %v994
        %v1123 = vunpack.c.h.b16 %v994
        %v1124 = vunpack.c.l.b16 %v995
        %v1125 = vunpack.c.h.b16 %v995
        %v1126 = vunpack.c.l.b16 %v996
        %v1127 = vunpack.c.h.b16 %v996
        %v1128 = vunpack.c.l.b16 %v997
        %v1129 = vunpack.c.h.b16 %v997
        %v1130 = vunpack.c.l.b16 %v998
        %v1131 = vunpack.c.h.b16 %v998
        %v1132 = vunpack.c.l.b16 %v999
        %v1133 = vunpack.c.h.b16 %v999
        %v1134 = vunpack.c.l.b16 %v1000
        %v1135 = vunpack.c.h.b16 %v1000
        %v1136 = vunpack.c.l.b16 %v1001
        %v1137 = vunpack.c.h.b16 %v1001
        %v1138 = vunpack.c.l.b16 %v1002
        %v1139 = vunpack.c.h.b16 %v1002
        %v1140 = vpack.c.b16 %v1068, %v1064
        %v1141 = vpack.c.b16 %v1069, %v1065
        %v1142 = vpack.c.b16 %v1070, %v1066
        %v1143 = vpack.c.b16 %v1071, %v1067
        %v1144 = vpack.c.b16 %v1076, %v1072
        %v1145 = vpack.c.b16 %v1077, %v1073
        %v1146 = vpack.c.b16 %v1078, %v1074
        %v1147 = vpack.c.b16 %v1079, %v1075
        %v1148 = vpack.c.b16 %v1084, %v1080
        %v1149 = vpack.c.b16 %v1085, %v1081
        %v1150 = vpack.c.b16 %v1086, %v1082
        %v1151 = vpack.c.b16 %v1087, %v1083
        %v1152 = vpack.c.b16 %v1092, %v1088
        %v1153 = vpack.c.b16 %v1093, %v1089
        %v1154 = vpack.c.b16 %v1094, %v1090
        %v1155 = vpack.c.b16 %v1095, %v1091
        %v1156 = vpack.c.b16 %v1100, %v1096
        %v1157 = vpack.c.b16 %v1101, %v1097
        %v1158 = vpack.c.b16 %v1102, %v1098
        %v1159 = vpack.c.b16 %v1103, %v1099
        %v1160 = vpack.c.b16 %v1108, %v1104
        %v1161 = vpack.c.b16 %v1109, %v1105
        %v1162 = vpack.c.b16 %v1110, %v1106
        %v1163 = vpack.c.b16 %v1111, %v1107
        %v1164 = vpack.c.b16 %v1116, %v1112
        %v1165 = vpack.c.b16 %v1117, %v1113
        %v1166 = vpack.c.b16 %v1118, %v1114
        %v1167 = vpack.c.b16 %v1119, %v1115
        %v1168 = vpack.c.b16 %v1124, %v1120
        %v1169 = vpack.c.b16 %v1125, %v1121
        %v1170 = vpack.c.b16 %v1126, %v1122
        %v1171 = vpack.c.b16 %v1127, %v1123
        %v1172 = vpack.c.b16 %v1132, %v1128
        %v1173 = vpack.c.b16 %v1133, %v1129
        %v1174 = vpack.c.b16 %v1134, %v1130
        %v1175 = vpack.c.b16 %v1135, %v1131
        %v1176 = vpack.c.b16 %v1136, %v1136
        %v1177 = vpack.c.b16 %v1137, %v1137
        %v1178 = vpack.c.b16 %v1138, %v1138
        %v1179 = vpack.c.b16 %v1139, %v1139
        %v1217 = vand.u32 %v1176, %v850
        %v1220 = vand.u32 %v1177, %v850
        %v1223 = vand.u32 %v1178, %v850
        %v1226 = vand.u32 %v1179, %v850
        %1228 = vmatprep.subr.bf16.mxu0 %v1141
        %1229 = vmatpush1.bf16.msra.mxu0 %v1140
        %1230 = vmatprep.subr.bf16.mxu0 %v1145
        %1231 = vmatpush1.bf16.msra.mxu0 %v1144
        %1232 = vmatprep.subr.bf16.mxu0 %v1149
        %1233 = vmatpush1.bf16.msra.mxu0 %v1148
        %1234 = vmatprep.subr.bf16.mxu0 %v1153
        %1235 = vmatpush1.bf16.msra.mxu0 %v1152
        %1236 = vmatprep.subr.bf16.mxu0 %v1157
        %1237 = vmatpush1.bf16.msra.mxu0 %v1156
        %1238 = vmatprep.subr.bf16.mxu0 %v1161
        %1239 = vmatpush1.bf16.msra.mxu0 %v1160
        %1240 = vmatprep.subr.bf16.mxu0 %v1165
        %1241 = vmatpush1.bf16.msra.mxu0 %v1164
        %1242 = vmatprep.subr.bf16.mxu0 %v1169
        %1243 = vmatpush1.bf16.msra.mxu0 %v1168
        %1244 = vmatprep.subr.bf16.mxu0 %v1173
        %1245 = vmatpush1.bf16.msra.mxu0 %v1172
        %1246 = vmatprep.subr.bf16.mxu0 %v1220
        %1247 = vmatpush1.bf16.msra.mxu0 %v1217
        %1248 = vmatprep.subr.bf16.mxu0 0
        %1249 = vmatpush1.bf16.msra.mxu0 0
        %1250 = vmatprep.subr.bf16.mxu0 0
        %1251 = vmatpush1.bf16.msra.mxu0 0
        %1252 = vmatprep.subr.bf16.mxu0 0
        %1253 = vmatpush1.bf16.msra.mxu0 0
        %1254 = vmatprep.subr.bf16.mxu0 0
        %1255 = vmatpush1.bf16.msra.mxu0 0
        %1256 = vmatprep.subr.bf16.mxu0 0
        %1257 = vmatpush1.bf16.msra.mxu0 0
        %1258 = vmatprep.subr.bf16.mxu0 0
        %1259 = vmatpush1.bf16.msra.mxu0 0
        %1260 = vmatprep.mubr.bf16.mxu0 %v846
        %1261 = vmatmul.mubr.bf16.gmra.mrb[0].mxu0 %v645
        %v1262 = vpop.f32.mrb[0].mxu0
        %v1263 = vadd.f32 %v1009, %v1262
        %v1264 = vpop.f32.mrb[0].mxu0
        %v1265 = vadd.f32 %v1013, %v1264
        %v1266 = vpop.f32.mrb[0].mxu0
        %v1267 = vpop.f32.mrb[0].mxu0
        %1268 = vdwg.mxu0
        %1269 = vmatprep.subr.bf16.mxu0 %v1143
        %1270 = vmatpush1.bf16.msra.mxu0 %v1142
        %1271 = vmatprep.subr.bf16.mxu0 %v1147
        %1272 = vmatpush1.bf16.msra.mxu0 %v1146
        %1273 = vmatprep.subr.bf16.mxu0 %v1151
        %1274 = vmatpush1.bf16.msra.mxu0 %v1150
        %1275 = vmatprep.subr.bf16.mxu0 %v1155
        %1276 = vmatpush1.bf16.msra.mxu0 %v1154
        %1277 = vmatprep.subr.bf16.mxu0 %v1159
        %1278 = vmatpush1.bf16.msra.mxu0 %v1158
        %1279 = vmatprep.subr.bf16.mxu0 %v1163
        %1280 = vmatpush1.bf16.msra.mxu0 %v1162
        %1281 = vmatprep.subr.bf16.mxu0 %v1167
        %1282 = vmatpush1.bf16.msra.mxu0 %v1166
        %1283 = vmatprep.subr.bf16.mxu0 %v1171
        %1284 = vmatpush1.bf16.msra.mxu0 %v1170
        %1285 = vmatprep.subr.bf16.mxu0 %v1175
        %1286 = vmatpush1.bf16.msra.mxu0 %v1174
        %1287 = vmatprep.subr.bf16.mxu0 %v1226
        %1288 = vmatpush1.bf16.msra.mxu0 %v1223
        %1289 = vmatprep.subr.bf16.mxu0 0
        %1290 = vmatpush1.bf16.msra.mxu0 0
        %1291 = vmatprep.subr.bf16.mxu0 0
        %1292 = vmatpush1.bf16.msra.mxu0 0
        %1293 = vmatprep.subr.bf16.mxu0 0
        %1294 = vmatpush1.bf16.msra.mxu0 0
        %1295 = vmatprep.subr.bf16.mxu0 0
        %1296 = vmatpush1.bf16.msra.mxu0 0
        %1297 = vmatprep.subr.bf16.mxu0 0
        %1298 = vmatpush1.bf16.msra.mxu0 0
        %1299 = vmatprep.subr.bf16.mxu0 0
        %1300 = vmatpush1.bf16.msra.mxu0 0
        %1301 = vmatprep.mubr.bf16.mxu0 %v846
        %1302 = vmatmul.mubr.bf16.gmra.mrb[0].mxu0 %v645
        %v1303 = vpop.f32.mrb[0].mxu0
        %v1304 = vadd.f32 %v1017, %v1303
        %v1305 = vpop.f32.mrb[0].mxu0
        %v1306 = vadd.f32 %v1021, %v1305
        %v1307 = vpop.f32.mrb[0].mxu0
        %v1308 = vpop.f32.mrb[0].mxu0
        %1309 = vdwg.mxu0
        %s1310 = scalar_lea.vmem %s500, 304 [#allocation2]
        %v1311 = vld [vmem:[%s1310] sm:$0xff]
        %v1312 = vld [vmem:[%s1310 + $0x8] sm:$0xff]
        %v1313 = vld [vmem:[%s1310 + $0x10] sm:$0xff]
        %v1314 = vld [vmem:[%s1310 + $0x18] sm:$0xff]
        %v1315 = vld [vmem:[%s1310 + $0x20] sm:$0xff]
        %v1316 = vld [vmem:[%s1310 + $0x28] sm:$0xff]
        %v1317 = vld [vmem:[%s1310 + $0x30] sm:$0xff]
        %v1318 = vld [vmem:[%s1310 + $0x38] sm:$0xff]
        %v1319 = vld [vmem:[%s1310 + $0x40] sm:$0xff]
        %v1320 = vld [vmem:[%s1310 + $0x48] sm:$0xff]
        %v1321 = vld [vmem:[%s1310 + $0x50] sm:$0xff]
        %v1322 = vld [vmem:[%s1310 + $0x58] sm:$0xff]
        %v1323 = vld [vmem:[%s1310 + $0x60] sm:$0xff]
        %v1324 = vld [vmem:[%s1310 + $0x68] sm:$0xff]
        %v1325 = vld [vmem:[%s1310 + $0x70] sm:$0xff]
        %v1326 = vld [vmem:[%s1310 + $0x78] sm:$0xff]
        %v1327 = vld [vmem:[%s1310 + $0x80] sm:$0xff]
        %v1328 = vld [vmem:[%s1310 + $0x88] sm:$0xff]
        %v1329 = vld [vmem:[%s1310 + $0x90] sm:$0x55]
        %v1330 = vunpack.c.l.s8.bf16 %v1311
        %v1331 = vunpack.c.h.s8.bf16 %v1311
        %v1332 = vunpack.c.l.s8.bf16 %v1312
        %v1333 = vunpack.c.h.s8.bf16 %v1312
        %v1334 = vunpack.c.l.s8.bf16 %v1313
        %v1335 = vunpack.c.h.s8.bf16 %v1313
        %v1336 = vunpack.c.l.s8.bf16 %v1314
        %v1337 = vunpack.c.h.s8.bf16 %v1314
        %v1338 = vunpack.c.l.s8.bf16 %v1315
        %v1339 = vunpack.c.h.s8.bf16 %v1315
        %v1340 = vunpack.c.l.s8.bf16 %v1316
        %v1341 = vunpack.c.h.s8.bf16 %v1316
        %v1342 = vunpack.c.l.s8.bf16 %v1317
        %v1343 = vunpack.c.h.s8.bf16 %v1317
        %v1344 = vunpack.c.l.s8.bf16 %v1318
        %v1345 = vunpack.c.h.s8.bf16 %v1318
        %v1346 = vunpack.c.l.s8.bf16 %v1319
        %v1347 = vunpack.c.h.s8.bf16 %v1319
        %v1348 = vunpack.c.l.s8.bf16 %v1320
        %v1349 = vunpack.c.h.s8.bf16 %v1320
        %v1350 = vunpack.c.l.s8.bf16 %v1321
        %v1351 = vunpack.c.h.s8.bf16 %v1321
        %v1352 = vunpack.c.l.s8.bf16 %v1322
        %v1353 = vunpack.c.h.s8.bf16 %v1322
        %v1354 = vunpack.c.l.s8.bf16 %v1323
        %v1355 = vunpack.c.h.s8.bf16 %v1323
        %v1356 = vunpack.c.l.s8.bf16 %v1324
        %v1357 = vunpack.c.h.s8.bf16 %v1324
        %v1358 = vunpack.c.l.s8.bf16 %v1325
        %v1359 = vunpack.c.h.s8.bf16 %v1325
        %v1360 = vunpack.c.l.s8.bf16 %v1326
        %v1361 = vunpack.c.h.s8.bf16 %v1326
        %v1362 = vunpack.c.l.s8.bf16 %v1327
        %v1363 = vunpack.c.h.s8.bf16 %v1327
        %v1364 = vunpack.c.l.s8.bf16 %v1328
        %v1365 = vunpack.c.h.s8.bf16 %v1328
        %v1366 = vunpack.c.l.s8.bf16 %v1329
        %v1367 = vunpack.c.h.s8.bf16 %v1329
        %s1368 = scalar_lea.vmem %s545, 2
        %v1369 = vld [vmem:[%s1368] ss:$4 sm:$0xf]
        %v1371 = vlaneseq
        %v1372 = vshrl.u32 %v1371, 7
        %v1373 = vsub.s32 0, %v1372
        %v1374 = vrot.slane %v1369, %v1373
        %v1375 = vlaneseq
        %v1376 = vshrl.u32 %v1375, 7
        %v1377 = vsub.s32 1, %v1376
        %v1378 = vrot.slane %v1369, %v1377
        %v1379 = vlaneseq
        %v1380 = vshrl.u32 %v1379, 7
        %v1381 = vsub.s32 2, %v1380
        %v1382 = vrot.slane %v1369, %v1381
        %v1383 = vlaneseq
        %v1384 = vshrl.u32 %v1383, 7
        %v1385 = vsub.s32 3, %v1384
        %v1386 = vrot.slane %v1369, %v1385
        %v1429 = vunpack.c.l.b16 %v1330
        %v1430 = vunpack.c.h.b16 %v1330
        %v1431 = vunpack.c.l.b16 %v1331
        %v1432 = vunpack.c.h.b16 %v1331
        %v1433 = vunpack.c.l.b16 %v1332
        %v1434 = vunpack.c.h.b16 %v1332
        %v1435 = vunpack.c.l.b16 %v1333
        %v1436 = vunpack.c.h.b16 %v1333
        %v1437 = vunpack.c.l.b16 %v1334
        %v1438 = vunpack.c.h.b16 %v1334
        %v1439 = vunpack.c.l.b16 %v1335
        %v1440 = vunpack.c.h.b16 %v1335
        %v1441 = vunpack.c.l.b16 %v1336
        %v1442 = vunpack.c.h.b16 %v1336
        %v1443 = vunpack.c.l.b16 %v1337
        %v1444 = vunpack.c.h.b16 %v1337
        %v1445 = vunpack.c.l.b16 %v1338
        %v1446 = vunpack.c.h.b16 %v1338
        %v1447 = vunpack.c.l.b16 %v1339
        %v1448 = vunpack.c.h.b16 %v1339
        %v1449 = vunpack.c.l.b16 %v1340
        %v1450 = vunpack.c.h.b16 %v1340
        %v1451 = vunpack.c.l.b16 %v1341
        %v1452 = vunpack.c.h.b16 %v1341
        %v1453 = vunpack.c.l.b16 %v1342
        %v1454 = vunpack.c.h.b16 %v1342
        %v1455 = vunpack.c.l.b16 %v1343
        %v1456 = vunpack.c.h.b16 %v1343
        %v1457 = vunpack.c.l.b16 %v1344
        %v1458 = vunpack.c.h.b16 %v1344
        %v1459 = vunpack.c.l.b16 %v1345
        %v1460 = vunpack.c.h.b16 %v1345
        %v1461 = vunpack.c.l.b16 %v1346
        %v1462 = vunpack.c.h.b16 %v1346
        %v1463 = vunpack.c.l.b16 %v1347
        %v1464 = vunpack.c.h.b16 %v1347
        %v1465 = vunpack.c.l.b16 %v1348
        %v1466 = vunpack.c.h.b16 %v1348
        %v1467 = vunpack.c.l.b16 %v1349
        %v1468 = vunpack.c.h.b16 %v1349
        %v1469 = vunpack.c.l.b16 %v1350
        %v1470 = vunpack.c.h.b16 %v1350
        %v1471 = vunpack.c.l.b16 %v1351
        %v1472 = vunpack.c.h.b16 %v1351
        %v1473 = vunpack.c.l.b16 %v1352
        %v1474 = vunpack.c.h.b16 %v1352
        %v1475 = vunpack.c.l.b16 %v1353
        %v1476 = vunpack.c.h.b16 %v1353
        %v1477 = vunpack.c.l.b16 %v1354
        %v1478 = vunpack.c.h.b16 %v1354
        %v1479 = vunpack.c.l.b16 %v1355
        %v1480 = vunpack.c.h.b16 %v1355
        %v1481 = vunpack.c.l.b16 %v1356
        %v1482 = vunpack.c.h.b16 %v1356
        %v1483 = vunpack.c.l.b16 %v1357
        %v1484 = vunpack.c.h.b16 %v1357
        %v1485 = vunpack.c.l.b16 %v1358
        %v1486 = vunpack.c.h.b16 %v1358
        %v1487 = vunpack.c.l.b16 %v1359
        %v1488 = vunpack.c.h.b16 %v1359
        %v1489 = vunpack.c.l.b16 %v1360
        %v1490 = vunpack.c.h.b16 %v1360
        %v1491 = vunpack.c.l.b16 %v1361
        %v1492 = vunpack.c.h.b16 %v1361
        %v1493 = vunpack.c.l.b16 %v1362
        %v1494 = vunpack.c.h.b16 %v1362
        %v1495 = vunpack.c.l.b16 %v1363
        %v1496 = vunpack.c.h.b16 %v1363
        %v1497 = vunpack.c.l.b16 %v1364
        %v1498 = vunpack.c.h.b16 %v1364
        %v1499 = vunpack.c.l.b16 %v1365
        %v1500 = vunpack.c.h.b16 %v1365
        %v1501 = vunpack.c.l.b16 %v1366
        %v1502 = vunpack.c.h.b16 %v1366
        %v1503 = vunpack.c.l.b16 %v1367
        %v1504 = vunpack.c.h.b16 %v1367
        %v1505 = vpack.c.b16 %v1433, %v1429
        %v1506 = vpack.c.b16 %v1434, %v1430
        %v1507 = vpack.c.b16 %v1435, %v1431
        %v1508 = vpack.c.b16 %v1436, %v1432
        %v1509 = vpack.c.b16 %v1441, %v1437
        %v1510 = vpack.c.b16 %v1442, %v1438
        %v1511 = vpack.c.b16 %v1443, %v1439
        %v1512 = vpack.c.b16 %v1444, %v1440
        %v1513 = vpack.c.b16 %v1449, %v1445
        %v1514 = vpack.c.b16 %v1450, %v1446
        %v1515 = vpack.c.b16 %v1451, %v1447
        %v1516 = vpack.c.b16 %v1452, %v1448
        %v1517 = vpack.c.b16 %v1457, %v1453
        %v1518 = vpack.c.b16 %v1458, %v1454
        %v1519 = vpack.c.b16 %v1459, %v1455
        %v1520 = vpack.c.b16 %v1460, %v1456
        %v1521 = vpack.c.b16 %v1465, %v1461
        %v1522 = vpack.c.b16 %v1466, %v1462
        %v1523 = vpack.c.b16 %v1467, %v1463
        %v1524 = vpack.c.b16 %v1468, %v1464
        %v1525 = vpack.c.b16 %v1473, %v1469
        %v1526 = vpack.c.b16 %v1474, %v1470
        %v1527 = vpack.c.b16 %v1475, %v1471
        %v1528 = vpack.c.b16 %v1476, %v1472
        %v1529 = vpack.c.b16 %v1481, %v1477
        %v1530 = vpack.c.b16 %v1482, %v1478
        %v1531 = vpack.c.b16 %v1483, %v1479
        %v1532 = vpack.c.b16 %v1484, %v1480
        %v1533 = vpack.c.b16 %v1489, %v1485
        %v1534 = vpack.c.b16 %v1490, %v1486
        %v1535 = vpack.c.b16 %v1491, %v1487
        %v1536 = vpack.c.b16 %v1492, %v1488
        %v1537 = vpack.c.b16 %v1497, %v1493
        %v1538 = vpack.c.b16 %v1498, %v1494
        %v1539 = vpack.c.b16 %v1499, %v1495
        %v1540 = vpack.c.b16 %v1500, %v1496
        %v1541 = vpack.c.b16 %v1501, %v1501
        %v1542 = vpack.c.b16 %v1502, %v1502
        %v1543 = vpack.c.b16 %v1503, %v1503
        %v1544 = vpack.c.b16 %v1504, %v1504
        %v1582 = vand.u32 %v1541, %v850
        %v1585 = vand.u32 %v1542, %v850
        %v1588 = vand.u32 %v1543, %v850
        %v1591 = vand.u32 %v1544, %v850
        %1593 = vmatprep.subr.bf16.mxu0 %v1506
        %1594 = vmatpush1.bf16.msra.mxu0 %v1505
        %1595 = vmatprep.subr.bf16.mxu0 %v1510
        %1596 = vmatpush1.bf16.msra.mxu0 %v1509
        %1597 = vmatprep.subr.bf16.mxu0 %v1514
        %1598 = vmatpush1.bf16.msra.mxu0 %v1513
        %1599 = vmatprep.subr.bf16.mxu0 %v1518
        %1600 = vmatpush1.bf16.msra.mxu0 %v1517
        %1601 = vmatprep.subr.bf16.mxu0 %v1522
        %1602 = vmatpush1.bf16.msra.mxu0 %v1521
        %1603 = vmatprep.subr.bf16.mxu0 %v1526
        %1604 = vmatpush1.bf16.msra.mxu0 %v1525
        %1605 = vmatprep.subr.bf16.mxu0 %v1530
        %1606 = vmatpush1.bf16.msra.mxu0 %v1529
        %1607 = vmatprep.subr.bf16.mxu0 %v1534
        %1608 = vmatpush1.bf16.msra.mxu0 %v1533
        %1609 = vmatprep.subr.bf16.mxu0 %v1538
        %1610 = vmatpush1.bf16.msra.mxu0 %v1537
        %1611 = vmatprep.subr.bf16.mxu0 %v1585
        %1612 = vmatpush1.bf16.msra.mxu0 %v1582
        %1613 = vmatprep.subr.bf16.mxu0 0
        %1614 = vmatpush1.bf16.msra.mxu0 0
        %1615 = vmatprep.subr.bf16.mxu0 0
        %1616 = vmatpush1.bf16.msra.mxu0 0
        %1617 = vmatprep.subr.bf16.mxu0 0
        %1618 = vmatpush1.bf16.msra.mxu0 0
        %1619 = vmatprep.subr.bf16.mxu0 0
        %1620 = vmatpush1.bf16.msra.mxu0 0
        %1621 = vmatprep.subr.bf16.mxu0 0
        %1622 = vmatpush1.bf16.msra.mxu0 0
        %1623 = vmatprep.subr.bf16.mxu0 0
        %1624 = vmatpush1.bf16.msra.mxu0 0
        %1625 = vmatprep.mubr.bf16.mxu0 %v846
        %1626 = vmatmul.mubr.bf16.gmra.mrb[0].mxu0 %v645
        %v1627 = vpop.f32.mrb[0].mxu0
        %v1628 = vadd.f32 %v1374, %v1627
        %v1629 = vpop.f32.mrb[0].mxu0
        %v1630 = vadd.f32 %v1378, %v1629
        %v1631 = vpop.f32.mrb[0].mxu0
        %v1632 = vpop.f32.mrb[0].mxu0
        %1633 = vdwg.mxu0
        %1634 = vmatprep.subr.bf16.mxu0 %v1508
        %1635 = vmatpush1.bf16.msra.mxu0 %v1507
        %1636 = vmatprep.subr.bf16.mxu0 %v1512
        %1637 = vmatpush1.bf16.msra.mxu0 %v1511
        %1638 = vmatprep.subr.bf16.mxu0 %v1516
        %1639 = vmatpush1.bf16.msra.mxu0 %v1515
        %1640 = vmatprep.subr.bf16.mxu0 %v1520
        %1641 = vmatpush1.bf16.msra.mxu0 %v1519
        %1642 = vmatprep.subr.bf16.mxu0 %v1524
        %1643 = vmatpush1.bf16.msra.mxu0 %v1523
        %1644 = vmatprep.subr.bf16.mxu0 %v1528
        %1645 = vmatpush1.bf16.msra.mxu0 %v1527
        %1646 = vmatprep.subr.bf16.mxu0 %v1532
        %1647 = vmatpush1.bf16.msra.mxu0 %v1531
        %1648 = vmatprep.subr.bf16.mxu0 %v1536
        %1649 = vmatpush1.bf16.msra.mxu0 %v1535
        %1650 = vmatprep.subr.bf16.mxu0 %v1540
        %1651 = vmatpush1.bf16.msra.mxu0 %v1539
        %1652 = vmatprep.subr.bf16.mxu0 %v1591
        %1653 = vmatpush1.bf16.msra.mxu0 %v1588
        %1654 = vmatprep.subr.bf16.mxu0 0
        %1655 = vmatpush1.bf16.msra.mxu0 0
        %1656 = vmatprep.subr.bf16.mxu0 0
        %1657 = vmatpush1.bf16.msra.mxu0 0
        %1658 = vmatprep.subr.bf16.mxu0 0
        %1659 = vmatpush1.bf16.msra.mxu0 0
        %1660 = vmatprep.subr.bf16.mxu0 0
        %1661 = vmatpush1.bf16.msra.mxu0 0
        %1662 = vmatprep.subr.bf16.mxu0 0
        %1663 = vmatpush1.bf16.msra.mxu0 0
        %1664 = vmatprep.subr.bf16.mxu0 0
        %1665 = vmatpush1.bf16.msra.mxu0 0
        %1666 = vmatprep.mubr.bf16.mxu0 %v846
        %1667 = vmatmul.mubr.bf16.gmra.mrb[0].mxu0 %v645
        %v1668 = vpop.f32.mrb[0].mxu0
        %v1669 = vadd.f32 %v1382, %v1668
        %v1670 = vpop.f32.mrb[0].mxu0
        %v1671 = vadd.f32 %v1386, %v1670
        %v1672 = vpop.f32.mrb[0].mxu0
        %v1673 = vpop.f32.mrb[0].mxu0
        %1674 = vdwg.mxu0
        %v1675 = vld [vmem:[%s1] sm:$0xff]
        %v1676 = vld [vmem:[%s1 + $0x8] sm:$0xff]
        %v1677 = vld [vmem:[%s1 + $0x10] sm:$0xff]
        %v1678 = vld [vmem:[%s507] sm:$0xff]
        %v1679 = vld [vmem:[%s507 + $0x8] sm:$0xff]
        %v1680 = vld [vmem:[%s507 + $0x10] sm:$0xff]
        %v1681 = vld [vmem:[%s507 + $0x18] sm:$0xff]
        %v1682 = vunpack.c.l.bf16 %v1678
        %v1683 = vunpack.c.h.bf16 %v1678
        %v1684 = vunpack.c.l.bf16 %v1679
        %v1685 = vunpack.c.h.bf16 %v1679
        %v1686 = vunpack.c.l.bf16 %v1680
        %v1687 = vunpack.c.h.bf16 %v1680
        %v1688 = vunpack.c.l.bf16 %v1681
        %v1689 = vunpack.c.h.bf16 %v1681
        %vm1690 = vcmask 130048
        %v1692 = vsel %vm1690, %v1675, 0
        %v1695 = vsel %vm1690, %v1676, 0
        %v1698 = vsel %vm1690, %v1677, 0
        %1700 = vmatprep.subr.mxu0 %v1683
        %1701 = vmatpush1.msra.mxu0 %v1682
        %1702 = vmatprep.subr.mxu0 %v1687
        %1703 = vmatpush1.msra.mxu0 %v1686
        %1704 = vmatprep.subr.mxu0 0.0
        %1705 = vmatpush1.msra.mxu0 0.0
        %1706 = vmatprep.subr.mxu0 0.0
        %1707 = vmatpush1.msra.mxu0 0.0
        %1708 = vmatprep.subr.mxu0 0.0
        %1709 = vmatpush1.msra.mxu0 0.0
        %1710 = vmatprep.subr.mxu0 0.0
        %1711 = vmatpush1.msra.mxu0 0.0
        %1712 = vmatprep.subr.mxu0 0.0
        %1713 = vmatpush1.msra.mxu0 0.0
        %1714 = vmatprep.subr.mxu0 0.0
        %1715 = vmatpush1.msra.mxu0 0.0
        %1716 = vmatprep.subr.mxu0 0.0
        %1717 = vmatpush1.msra.mxu0 0.0
        %1718 = vmatprep.subr.mxu0 0.0
        %1719 = vmatpush1.msra.mxu0 0.0
        %1720 = vmatprep.subr.mxu0 0.0
        %1721 = vmatpush1.msra.mxu0 0.0
        %1722 = vmatprep.subr.mxu0 0.0
        %1723 = vmatpush1.msra.mxu0 0.0
        %1724 = vmatprep.subr.mxu0 0.0
        %1725 = vmatpush1.msra.mxu0 0.0
        %1726 = vmatprep.subr.mxu0 0.0
        %1727 = vmatpush1.msra.mxu0 0.0
        %1728 = vmatprep.subr.mxu0 0.0
        %1729 = vmatpush1.msra.mxu0 0.0
        %1730 = vmatprep.subr.mxu0 0.0
        %1731 = vmatpush1.msra.mxu0 0.0
        %1732 = vmatprep.subr.mxu0 0.0
        %1733 = vmatpush1.msra.mxu0 0.0
        %1734 = vmatprep.subr.mxu0 0.0
        %1735 = vmatpush1.msra.mxu0 0.0
        %1736 = vmatprep.subr.mxu0 0.0
        %1737 = vmatpush1.msra.mxu0 0.0
        %1738 = vmatprep.subr.mxu0 0.0
        %1739 = vmatpush1.msra.mxu0 0.0
        %1740 = vmatprep.subr.mxu0 0.0
        %1741 = vmatpush1.msra.mxu0 0.0
        %1742 = vmatprep.subr.mxu0 0.0
        %1743 = vmatpush1.msra.mxu0 0.0
        %1744 = vmatprep.subr.mxu0 0.0
        %1745 = vmatpush1.msra.mxu0 0.0
        %1746 = vmatprep.subr.mxu0 0.0
        %1747 = vmatpush1.msra.mxu0 0.0
        %1748 = vmatprep.subr.mxu0 0.0
        %1749 = vmatpush1.msra.mxu0 0.0
        %1750 = vmatprep.subr.mxu0 0.0
        %1751 = vmatpush1.msra.mxu0 0.0
        %1752 = vmatprep.subr.mxu0 0.0
        %1753 = vmatpush1.msra.mxu0 0.0
        %1754 = vmatprep.subr.mxu0 0.0
        %1755 = vmatpush1.msra.mxu0 0.0
        %1756 = vmatprep.subr.mxu0 0.0
        %1757 = vmatpush1.msra.mxu0 0.0
        %1758 = vmatprep.subr.mxu0 0.0
        %1759 = vmatpush1.msra.mxu0 0.0
        %1760 = vmatprep.subr.mxu0 0.0
        %1761 = vmatpush1.msra.mxu0 0.0
        %1762 = vmatprep.subr.mxu0 0.0
        %1763 = vmatpush1.msra.mxu0 0.0
        %1764 = vmatprep.mubr.f32.mxu0 0.0
        %1765 = vmatmul.mubr.f32.gmra.mrb[0].mxu0 %v1692
        %v1766 = vpop.f32.mrb[0].mxu0
        %v1767 = vadd.f32 0.0, %v1766
        %v1768 = vpop.f32.mrb[0].mxu0
        %v1769 = vadd.f32 0.0, %v1768
        %1770 = vmatprep.mubr.f32.mxu0 0.0
        %1771 = vmatmul.mubr.f32.gmra.mrb[0].mxu0 %v1695
        %v1772 = vpop.f32.mrb[0].mxu0
        %v1773 = vadd.f32 0.0, %v1772
        %v1774 = vpop.f32.mrb[0].mxu0
        %v1775 = vadd.f32 0.0, %v1774
        %1776 = vmatprep.mubr.f32.mxu0 0.0
        %1777 = vmatmul.mubr.f32.gmra.mrb[0].mxu0 %v1698
        %v1778 = vpop.f32.mrb[0].mxu0
        %v1779 = vadd.f32 0.0, %v1778
        %v1780 = vpop.f32.mrb[0].mxu0
        %v1781 = vadd.f32 0.0, %v1780
        %1782 = vdwg.mxu0
        %1783 = vmatprep.subr.mxu0 %v1685
        %1784 = vmatpush1.msra.mxu0 %v1684
        %1785 = vmatprep.subr.mxu0 %v1689
        %1786 = vmatpush1.msra.mxu0 %v1688
        %1787 = vmatprep.subr.mxu0 0.0
        %1788 = vmatpush1.msra.mxu0 0.0
        %1789 = vmatprep.subr.mxu0 0.0
        %1790 = vmatpush1.msra.mxu0 0.0
        %1791 = vmatprep.subr.mxu0 0.0
        %1792 = vmatpush1.msra.mxu0 0.0
        %1793 = vmatprep.subr.mxu0 0.0
        %1794 = vmatpush1.msra.mxu0 0.0
        %1795 = vmatprep.subr.mxu0 0.0
        %1796 = vmatpush1.msra.mxu0 0.0
        %1797 = vmatprep.subr.mxu0 0.0
        %1798 = vmatpush1.msra.mxu0 0.0
        %1799 = vmatprep.subr.mxu0 0.0
        %1800 = vmatpush1.msra.mxu0 0.0
        %1801 = vmatprep.subr.mxu0 0.0
        %1802 = vmatpush1.msra.mxu0 0.0
        %1803 = vmatprep.subr.mxu0 0.0
        %1804 = vmatpush1.msra.mxu0 0.0
        %1805 = vmatprep.subr.mxu0 0.0
        %1806 = vmatpush1.msra.mxu0 0.0
        %1807 = vmatprep.subr.mxu0 0.0
        %1808 = vmatpush1.msra.mxu0 0.0
        %1809 = vmatprep.subr.mxu0 0.0
        %1810 = vmatpush1.msra.mxu0 0.0
        %1811 = vmatprep.subr.mxu0 0.0
        %1812 = vmatpush1.msra.mxu0 0.0
        %1813 = vmatprep.subr.mxu0 0.0
        %1814 = vmatpush1.msra.mxu0 0.0
        %1815 = vmatprep.subr.mxu0 0.0
        %1816 = vmatpush1.msra.mxu0 0.0
        %1817 = vmatprep.subr.mxu0 0.0
        %1818 = vmatpush1.msra.mxu0 0.0
        %1819 = vmatprep.subr.mxu0 0.0
        %1820 = vmatpush1.msra.mxu0 0.0
        %1821 = vmatprep.subr.mxu0 0.0
        %1822 = vmatpush1.msra.mxu0 0.0
        %1823 = vmatprep.subr.mxu0 0.0
        %1824 = vmatpush1.msra.mxu0 0.0
        %1825 = vmatprep.subr.mxu0 0.0
        %1826 = vmatpush1.msra.mxu0 0.0
        %1827 = vmatprep.subr.mxu0 0.0
        %1828 = vmatpush1.msra.mxu0 0.0
        %1829 = vmatprep.subr.mxu0 0.0
        %1830 = vmatpush1.msra.mxu0 0.0
        %1831 = vmatprep.subr.mxu0 0.0
        %1832 = vmatpush1.msra.mxu0 0.0
        %1833 = vmatprep.subr.mxu0 0.0
        %1834 = vmatpush1.msra.mxu0 0.0
        %1835 = vmatprep.subr.mxu0 0.0
        %1836 = vmatpush1.msra.mxu0 0.0
        %1837 = vmatprep.subr.mxu0 0.0
        %1838 = vmatpush1.msra.mxu0 0.0
        %1839 = vmatprep.subr.mxu0 0.0
        %1840 = vmatpush1.msra.mxu0 0.0
        %1841 = vmatprep.subr.mxu0 0.0
        %1842 = vmatpush1.msra.mxu0 0.0
        %1843 = vmatprep.subr.mxu0 0.0
        %1844 = vmatpush1.msra.mxu0 0.0
        %1845 = vmatprep.subr.mxu0 0.0
        %1846 = vmatpush1.msra.mxu0 0.0
        %1847 = vmatprep.mubr.f32.mxu0 0.0
        %1848 = vmatmul.mubr.f32.gmra.mrb[0].mxu0 %v1692
        %v1849 = vpop.f32.mrb[0].mxu0
        %v1850 = vadd.f32 0.0, %v1849
        %v1851 = vpop.f32.mrb[0].mxu0
        %v1852 = vadd.f32 0.0, %v1851
        %1853 = vmatprep.mubr.f32.mxu0 0.0
        %1854 = vmatmul.mubr.f32.gmra.mrb[0].mxu0 %v1695
        %v1855 = vpop.f32.mrb[0].mxu0
        %v1856 = vadd.f32 0.0, %v1855
        %v1857 = vpop.f32.mrb[0].mxu0
        %v1858 = vadd.f32 0.0, %v1857
        %1859 = vmatprep.mubr.f32.mxu0 0.0
        %1860 = vmatmul.mubr.f32.gmra.mrb[0].mxu0 %v1698
        %v1861 = vpop.f32.mrb[0].mxu0
        %v1862 = vadd.f32 0.0, %v1861
        %v1863 = vpop.f32.mrb[0].mxu0
        %v1864 = vadd.f32 0.0, %v1863
        %1865 = vdwg.mxu0
        %v1866 = vmul.f32 %v1767, %v898
        %v1867 = vmul.f32 %v1769, %v900
        %v1868 = vmul.f32 %v1850, %v939
        %v1869 = vmul.f32 %v1852, %v941
        %v1874 = vrot.slane %v1263, 6
        %v1875 = vrot.slane %v1265, 6
        %v1876 = vrot.slane %v1304, 6
        %v1877 = vrot.slane %v1306, 6
        %v1882 = vmul.f32 %v1767, %v1874
        %v1883 = vmul.f32 %v1769, %v1875
        %v1884 = vmul.f32 %v1850, %v1876
        %v1885 = vmul.f32 %v1852, %v1877
        %v1890 = vrot.slane %v1882, 2
        %v1891 = vrot.slane %v1883, 2
        %v1892 = vrot.slane %v1884, 2
        %v1893 = vrot.slane %v1885, 2
        %v1898 = vadd.f32 %v1866, %v1890
        %v1899 = vadd.f32 %v1867, %v1891
        %v1900 = vadd.f32 %v1868, %v1892
        %v1901 = vadd.f32 %v1869, %v1893
        %v1906 = vrot.slane %v1628, 4
        %v1907 = vrot.slane %v1630, 4
        %v1908 = vrot.slane %v1669, 4
        %v1909 = vrot.slane %v1671, 4
        %v1914 = vmul.f32 %v1767, %v1906
        %v1915 = vmul.f32 %v1769, %v1907
        %v1916 = vmul.f32 %v1850, %v1908
        %v1917 = vmul.f32 %v1852, %v1909
        %v1922 = vrot.slane %v1914, 4
        %v1923 = vrot.slane %v1915, 4
        %v1924 = vrot.slane %v1916, 4
        %v1925 = vrot.slane %v1917, 4
        %v1930 = vadd.f32 %v1898, %v1922
        %v1931 = vadd.f32 %v1899, %v1923
        %v1932 = vadd.f32 %v1900, %v1924
        %v1933 = vadd.f32 %v1901, %v1925
        %v1938 = vrot.slane %v1767, 6
        %v1939 = vrot.slane %v1769, 6
        %v1940 = vrot.slane %v1850, 6
        %v1941 = vrot.slane %v1852, 6
        %v1946 = vadd.f32 %v1930, %v1938
        %v1947 = vadd.f32 %v1931, %v1939
        %v1948 = vadd.f32 %v1932, %v1940
        %v1949 = vadd.f32 %v1933, %v1941
        %v1954 = vcombine.low %v1946, %v1947
        %v1955 = vcombine.low %v1948, %v1949
        %v1957 = vunpack.c.l.s4 1983009808
        %v1958 = vunpack.c.0.s8 %v1957
        %v1959 = vlaneseq
        %v1960 = vshrl.u32 %v1959, 7
        %v1961 = vsub.s32 %v1958, %v1960
        %v1962 = vrot.slane %v1954, %v1961
        %v1964 = vunpack.c.l.s4 1983009808
        %v1965 = vunpack.c.0.s8 %v1964
        %v1966 = vlaneseq
        %v1967 = vshrl.u32 %v1966, 7
        %v1968 = vsub.s32 %v1965, %v1967
        %v1969 = vrot.slane %v1955, %v1968
        %v1970 = vcombine.low %v1962, %v1969
        %1972 = vst [vmem:[%s539] sm:$0xff] %v1970
        %v1973 = vmul.f32 %v1773, %v898
        %v1974 = vmul.f32 %v1775, %v900
        %v1975 = vmul.f32 %v1856, %v939
        %v1976 = vmul.f32 %v1858, %v941
        %v1977 = vmul.f32 %v1773, %v1874
        %v1978 = vmul.f32 %v1775, %v1875
        %v1979 = vmul.f32 %v1856, %v1876
        %v1980 = vmul.f32 %v1858, %v1877
        %v1985 = vrot.slane %v1977, 2
        %v1986 = vrot.slane %v1978, 2
        %v1987 = vrot.slane %v1979, 2
        %v1988 = vrot.slane %v1980, 2
        %v1993 = vadd.f32 %v1973, %v1985
        %v1994 = vadd.f32 %v1974, %v1986
        %v1995 = vadd.f32 %v1975, %v1987
        %v1996 = vadd.f32 %v1976, %v1988
        %v1997 = vmul.f32 %v1773, %v1906
        %v1998 = vmul.f32 %v1775, %v1907
        %v1999 = vmul.f32 %v1856, %v1908
        %v2000 = vmul.f32 %v1858, %v1909
        %v2005 = vrot.slane %v1997, 4
        %v2006 = vrot.slane %v1998, 4
        %v2007 = vrot.slane %v1999, 4
        %v2008 = vrot.slane %v2000, 4
        %v2013 = vadd.f32 %v1993, %v2005
        %v2014 = vadd.f32 %v1994, %v2006
        %v2015 = vadd.f32 %v1995, %v2007
        %v2016 = vadd.f32 %v1996, %v2008
        %v2021 = vrot.slane %v1773, 6
        %v2022 = vrot.slane %v1775, 6
        %v2023 = vrot.slane %v1856, 6
        %v2024 = vrot.slane %v1858, 6
        %v2029 = vadd.f32 %v2013, %v2021
        %v2030 = vadd.f32 %v2014, %v2022
        %v2031 = vadd.f32 %v2015, %v2023
        %v2032 = vadd.f32 %v2016, %v2024
        %v2037 = vcombine.low %v2029, %v2030
        %v2038 = vcombine.low %v2031, %v2032
        %v2040 = vunpack.c.l.s4 1983009808
        %v2041 = vunpack.c.0.s8 %v2040
        %v2042 = vlaneseq
        %v2043 = vshrl.u32 %v2042, 7
        %v2044 = vsub.s32 %v2041, %v2043
        %v2045 = vrot.slane %v2037, %v2044
        %v2047 = vunpack.c.l.s4 1983009808
        %v2048 = vunpack.c.0.s8 %v2047
        %v2049 = vlaneseq
        %v2050 = vshrl.u32 %v2049, 7
        %v2051 = vsub.s32 %v2048, %v2050
        %v2052 = vrot.slane %v2038, %v2051
        %v2053 = vcombine.low %v2045, %v2052
        %s2055 = scalar_lea.vmem %s539, 8 [#allocation4]
        %2056 = vst [vmem:[%s2055] sm:$0xff] %v2053
        %v2057 = vmul.f32 %v1779, %v898
        %v2058 = vmul.f32 %v1781, %v900
        %v2059 = vmul.f32 %v1862, %v939
        %v2060 = vmul.f32 %v1864, %v941
        %v2061 = vmul.f32 %v1779, %v1874
        %v2062 = vmul.f32 %v1781, %v1875
        %v2063 = vmul.f32 %v1862, %v1876
        %v2064 = vmul.f32 %v1864, %v1877
        %v2069 = vrot.slane %v2061, 2
        %v2070 = vrot.slane %v2062, 2
        %v2071 = vrot.slane %v2063, 2
        %v2072 = vrot.slane %v2064, 2
        %v2077 = vadd.f32 %v2057, %v2069
        %v2078 = vadd.f32 %v2058, %v2070
        %v2079 = vadd.f32 %v2059, %v2071
        %v2080 = vadd.f32 %v2060, %v2072
        %v2081 = vmul.f32 %v1779, %v1906
        %v2082 = vmul.f32 %v1781, %v1907
        %v2083 = vmul.f32 %v1862, %v1908
        %v2084 = vmul.f32 %v1864, %v1909
        %v2089 = vrot.slane %v2081, 4
        %v2090 = vrot.slane %v2082, 4
        %v2091 = vrot.slane %v2083, 4
        %v2092 = vrot.slane %v2084, 4
        %v2097 = vadd.f32 %v2077, %v2089
        %v2098 = vadd.f32 %v2078, %v2090
        %v2099 = vadd.f32 %v2079, %v2091
        %v2100 = vadd.f32 %v2080, %v2092
        %v2105 = vrot.slane %v1779, 6
        %v2106 = vrot.slane %v1781, 6
        %v2107 = vrot.slane %v1862, 6
        %v2108 = vrot.slane %v1864, 6
        %v2113 = vadd.f32 %v2097, %v2105
        %v2114 = vadd.f32 %v2098, %v2106
        %v2115 = vadd.f32 %v2099, %v2107
        %v2116 = vadd.f32 %v2100, %v2108
        %v2121 = vcombine.low %v2113, %v2114
        %v2122 = vcombine.low %v2115, %v2116
        %v2124 = vunpack.c.l.s4 1983009808
        %v2125 = vunpack.c.0.s8 %v2124
        %v2126 = vlaneseq
        %v2127 = vshrl.u32 %v2126, 7
        %v2128 = vsub.s32 %v2125, %v2127
        %v2129 = vrot.slane %v2121, %v2128
        %v2131 = vunpack.c.l.s4 1983009808
        %v2132 = vunpack.c.0.s8 %v2131
        %v2133 = vlaneseq
        %v2134 = vshrl.u32 %v2133, 7
        %v2135 = vsub.s32 %v2132, %v2134
        %v2136 = vrot.slane %v2122, %v2135
        %v2137 = vcombine.low %v2129, %v2136
        %s2139 = scalar_lea.vmem %s539, 16 [#allocation4]
        %2140 = vst [vmem:[%s2139] sm:$0xff] %v2137
        %s2141 = sand.u32 %s144, 1
        %s2142 = sand.u32 %s144, 1
        %s2143 = smul.addr %s2142, 24
        %s2144 = scalar_lea.vmem [#allocation4], %s2143
        // Predicated region
        $region102: #{mano_v2_forward.1} parent=92 // pred_check
          %p2145 = pneg %p154
        $region103: #{mano_v2_forward.1} parent=92 // pred_check_branch
          %2147 = sbr.rel (%p2145) target = $region105
        $region104: #{mano_v2_forward.1} parent=92 // pred_region
          %s2148 = smul.u32 4, %s16
          %s2149 = smul.addr %s2148, 2
          %s2150 = scalar_lea.vmem %s5, %s2149
          // Predicated region
          $region106: #{mano_v2_forward.1} parent=104 // pred_check
            _
          $region107: #{mano_v2_forward.1} parent=104 // pred_check_branch
            %2152 = sbr.rel (0) target = $region109
          $region108: #{mano_v2_forward.1} parent=104 // pred_region
            // Predicated region
            $region110: #{mano_v2_forward.1} parent=108 // pred_check
              _
            $region111: #{mano_v2_forward.1} parent=108 // pred_check_branch
              %2154 = sbr.rel (0) target = $region113
            $region112: #{mano_v2_forward.1} parent=108 // pred_region
              // Predicated region
              $region125: #{mano_v2_forward.1} parent=112 // pred_check
                _
              $region126: #{mano_v2_forward.1} parent=112 // pred_check_branch
                %2173 = sbr.rel (0) target = $region128
              $region127: #{mano_v2_forward.1} parent=112 // pred_region
                loop: start=0, step=1, limit=1
                $region129: #{mano_v2_forward.1} parent=127 // loop_pre_header
                  _
                $region130: #{mano_v2_forward.1} parent=127 // loop_header
                  %s2175 = sphi 0, %s2179
                  %p2176 = scmp.ge.s32.totalorder %s2175, 1
                  %s2180 = sphi %s2144, %s2144
                  %s2181 = sphi %s2150, %s2150
                $region131: #{mano_v2_forward.1} parent=127 // loop_header_branch
                  %2178 = sbr.rel (%p2176) target = $region135
                $region132: #{mano_v2_forward.1} parent=127 // loop_body
                  %v2182 = vld [vmem:[%s2180] sm:$0xff]
                  %2183 = vst [vmem:[%s2181] sm:$0xff] %v2182
                  %v2184 = vld [vmem:[%s2180 + $0x8] sm:$0xff]
                  %2185 = vst [vmem:[%s2181 + $0x10] sm:$0xff] %v2184
                  %v2186 = vld [vmem:[%s2180 + $0x10] sm:$0xff]
                  %2187 = vst [vmem:[%s2181 + $0x20] sm:$0xff] %v2186
                $region133: #{mano_v2_forward.1} parent=127 // loop_footer
                  %s2179 = sadd.s32 1, %s2175
                $region134: #{mano_v2_forward.1} parent=127 // loop_footer_branch
                  %2174 = sbr.rel target = $region130
                $region135: #{mano_v2_forward.1} parent=127 // loop_exit
                  _
              $region128: #{mano_v2_forward.1} parent=112 // pred_fallthru
                _
              // Predicated region
              $region136: #{mano_v2_forward.1} parent=112 // pred_check
                _
              $region137: #{mano_v2_forward.1} parent=112 // pred_check_branch
                %2189 = sbr.rel target = $region139
              $region138: #{mano_v2_forward.1} parent=112 // pred_region
                _
              $region139: #{mano_v2_forward.1} parent=112 // pred_fallthru
                _
            $region113: #{mano_v2_forward.1} parent=108 // pred_fallthru
              _
            // Predicated region
            $region114: #{mano_v2_forward.1} parent=108 // pred_check
              _
            $region115: #{mano_v2_forward.1} parent=108 // pred_check_branch
              %2156 = sbr.rel target = $region117
            $region116: #{mano_v2_forward.1} parent=108 // pred_region
              loop: start=0, step=1, limit=1
              $region118: #{mano_v2_forward.1} parent=116 // loop_pre_header
                _
              $region119: #{mano_v2_forward.1} parent=116 // loop_header
                %s2159 = sphi 0, %s2163
                %p2160 = scmp.ge.s32.totalorder %s2159, 1
                %s2164 = sphi %s2144, %s2144
                %s2165 = sphi %s2150, %s2150
              $region120: #{mano_v2_forward.1} parent=116 // loop_header_branch
                %2162 = sbr.rel (%p2160) target = $region124
              $region121: #{mano_v2_forward.1} parent=116 // loop_body
                %v2166 = vld [vmem:[%s2164] sm:$0xff]
                %2167 = vst [vmem:[%s2165] sm:$0xff] %v2166
                %v2168 = vld [vmem:[%s2164 + $0x8] sm:$0xff]
                %2169 = vst [vmem:[%s2165 + $0x10] sm:$0xff] %v2168
                %v2170 = vld [vmem:[%s2164 + $0x10] sm:$0xff]
                %2171 = vst [vmem:[%s2165 + $0x20] sm:$0xff] %v2170
              $region122: #{mano_v2_forward.1} parent=116 // loop_footer
                %s2163 = sadd.s32 1, %s2159
              $region123: #{mano_v2_forward.1} parent=116 // loop_footer_branch
                %2158 = sbr.rel target = $region119
              $region124: #{mano_v2_forward.1} parent=116 // loop_exit
                _
            $region117: #{mano_v2_forward.1} parent=108 // pred_fallthru
              _
          $region109: #{mano_v2_forward.1} parent=104 // pred_fallthru
            _
          %2190 = vnop
        $region105: #{mano_v2_forward.1} parent=92 // pred_fallthru
          _
      $region93: #{mano_v2_forward.1} parent=5 // pred_fallthru
        _
      %p2191 = scmp.le.s32.totalorder 2, %s11
      // Predicated region
      $region140: #{mano_v2_forward.1} parent=5 // pred_check
        %p2192 = pneg %p2191
      $region141: #{mano_v2_forward.1} parent=5 // pred_check_branch
        %2194 = sbr.rel (%p2192) target = $region143
      $region142: #{mano_v2_forward.1} parent=5 // pred_region
        %s2195 = ssub.s32 %s11, 2
        // Predicated region
        $region144: #{mano_v2_forward.1} parent=142 // pred_check
          %p2196 = pneg %p160
        $region145: #{mano_v2_forward.1} parent=142 // pred_check_branch
          %2198 = sbr.rel (%p2196) target = $region147
        $region146: #{mano_v2_forward.1} parent=142 // pred_region
          %s2199 = sand.u32 %s145, 1
          %s2200 = sand.u32 %s145, 1
          %s2201 = smul.addr %s2200, 24
          %s2202 = scalar_lea.vmem [#allocation4], %s2201
        $region147: #{mano_v2_forward.1} parent=142 // pred_fallthru
          _
      $region143: #{mano_v2_forward.1} parent=5 // pred_fallthru
        _
    $region6: #{mano_v2_forward.1} parent=1 // loop_footer
      %s15 = sadd.s32 1, %s11
    $region7: #{mano_v2_forward.1} parent=1 // loop_footer_branch
      %10 = sbr.rel target = $region3
    $region8: #{mano_v2_forward.1} parent=1 // loop_exit
      _

</llo_original>
